<compile_context>
chip_gen: v6e
topology: v6e:2x2x1
jax: 0.10.0
libtpu: 0.0.40
codegen_flags: <defaults>
</compile_context>

<pallas_src>
import jax
import jax.numpy as jnp
from jax.experimental import pallas as pl
from jax.experimental.pallas import tpu as pltpu

IN_FEATS = 74
HIDDEN = 100
PRED_HIDDEN = 64
N_TASKS = 1          # predict head is specialized to a lane reduction (module default n_tasks=1)

F_PAD = 128          # padded input-feature width (74 -> 128)
H_PAD = 128          # padded hidden width (100 -> 128)

# Row layout of the single packed parameter slab [_SLAB_ROWS, _SLAB_COLS].
_W1_ROW = 0                       # [0:128]    fused layer-1 weight  [F_PAD, 2*H_PAD] = [Ws1 | Wn1]
_W2_ROW = F_PAD                   # [128:256]  fused layer-2 weight  [H_PAD, 2*H_PAD] = [Ws2 | Wn2]
_VEC_ROW = F_PAD + H_PAD          # 256: start of the vector rows (lanes 0:128 used)
_B1_ROW = _VEC_ROW + 0            # layer-1 bias
_B2_ROW = _VEC_ROW + 1            # layer-2 bias
_WA_ROW = _VEC_ROW + 2            # atom-weighting vector
_WEFFS_ROW = _VEC_ROW + 3         # composed predict head, rows acting on the weighted-sum part
_WEFFM_ROW = _VEC_ROW + 4         # composed predict head, rows acting on the max part
_SCAL_ROW = _VEC_ROW + 5          # lane 0: atom-weighting bias, lane 1: composed predict bias
_SLAB_ROWS = _VEC_ROW + 8         # 264 (multiple of 8)
_SLAB_COLS = 2 * H_PAD            # 256


def _make_kernel(gb: int, n: int):
    """Kernel processing one group of `gb` graphs with `n` nodes each per grid step."""
    gbn = gb * n

    def kernel(adj_ref, x_ref, w_ref, out_ref, xpad_ref):
        # --- stage 74-wide features into a zeroed 128-lane buffer (K-aligned for the MXU) ----
        xpad_ref[...] = jnp.zeros_like(xpad_ref)
        xpad_ref[:, :IN_FEATS] = x_ref[...]
        x = xpad_ref[...]                                   # [gbn, 128]
        adj = adj_ref[...]                                  # [gbn, gbn] block-diag, 1/deg folded in

        b1 = w_ref[_B1_ROW:_B1_ROW + 1, 0:H_PAD]            # [1, 128]
        b2 = w_ref[_B2_ROW:_B2_ROW + 1, 0:H_PAD]
        wa = w_ref[_WA_ROW:_WA_ROW + 1, 0:H_PAD]
        weff_s = w_ref[_WEFFS_ROW:_WEFFS_ROW + 1, 0:H_PAD]
        weff_m = w_ref[_WEFFM_ROW:_WEFFM_ROW + 1, 0:H_PAD]
        ba = w_ref[_SCAL_ROW:_SCAL_ROW + 1, 0:1]             # [1, 1]
        beff = w_ref[_SCAL_ROW:_SCAL_ROW + 1, 1:2]           # [1, 1]

        # ---- SAGEConv layer 1: relu(x @ Ws1 + A_norm @ (x @ Wn1) + b1), fused [Ws1 | Wn1] ----
        xw = jnp.dot(x, w_ref[_W1_ROW:_W1_ROW + F_PAD, :],
                     preferred_element_type=jnp.float32)                      # [gbn, 256]
        h = xw[:, :H_PAD] + jnp.dot(adj, xw[:, H_PAD:],
                                    preferred_element_type=jnp.float32)
        h = jnp.maximum(h + b1, 0.0)                                          # [gbn, 128]

        # ---- SAGEConv layer 2 ----------------------------------------------------------------
        hw = jnp.dot(h, w_ref[_W2_ROW:_W2_ROW + H_PAD, :],
                     preferred_element_type=jnp.float32)                      # [gbn, 256]
        h = hw[:, :H_PAD] + jnp.dot(adj, hw[:, H_PAD:],
                                    preferred_element_type=jnp.float32)
        h = jnp.maximum(h + b2, 0.0)                                          # [gbn, 128]

        # ---- WeightedSumAndMax readout + pre-composed predict head ----------------------------
        logits = jnp.sum(h * wa, axis=-1, keepdims=True) + ba                 # [gbn, 1]
        atom_w = jax.nn.sigmoid(logits)                                       # EUP, ~free
        hw_nodes = atom_w * h                                                 # [gbn, 128]

        # Per-graph segment reductions, unrolled over the GB graphs in this group.  These are a
        # handful of XLU sublane reduces + lane reduces that hide under the MXU work above.
        for g in range(gb):
            sl = slice(g * n, (g + 1) * n)
            h_sum = jnp.sum(hw_nodes[sl, :], axis=0, keepdims=True)           # [1, 128]
            h_max = jnp.max(h[sl, :], axis=0, keepdims=True)                  # [1, 128]
            out_ref[g:g + 1, :] = (
                jnp.sum(h_sum * weff_s + h_max * weff_m, axis=-1, keepdims=True) + beff)

    return kernel


def _pack_params(params):
    """Pack all parameters into one 128-lane-aligned, grid-invariant slab (single DMA)."""
    (ws1, wn1, b1, ws2, wn2, b2, wa, ba, wp1, bp1, wp2, bp2) = params
    assert N_TASKS == 1 and wp2.shape[1] == 1   # head is specialized to a lane reduction

    def pad2(w, rows, cols):
        return jnp.zeros((rows, cols), jnp.float32).at[: w.shape[0], : w.shape[1]].set(w)

    def pad1(v, m):
        return jnp.zeros((m,), jnp.float32).at[: v.shape[0]].set(v)

    # The two predict Linears have no nonlinearity between them, so they compose exactly:
    #   out = feat @ (Wp1 @ Wp2) + (bp1 @ Wp2 + bp2)
    w_eff = wp1 @ wp2                        # [2H, 1]
    b_eff = bp1 @ wp2 + bp2                  # [1]

    # Fused per-layer weights: [in_pad, 2*H_PAD] = [W_self | W_neigh]
    w1f = jnp.concatenate([pad2(ws1, F_PAD, H_PAD), pad2(wn1, F_PAD, H_PAD)], axis=1)
    w2f = jnp.concatenate([pad2(ws2, H_PAD, H_PAD), pad2(wn2, H_PAD, H_PAD)], axis=1)

    slab = jnp.zeros((_SLAB_ROWS, _SLAB_COLS), jnp.float32)
    slab = slab.at[_W1_ROW:_W1_ROW + F_PAD, :].set(w1f)
    slab = slab.at[_W2_ROW:_W2_ROW + H_PAD, :].set(w2f)
    slab = slab.at[_B1_ROW, :H_PAD].set(pad1(b1, H_PAD))
    slab = slab.at[_B2_ROW, :H_PAD].set(pad1(b2, H_PAD))
    slab = slab.at[_WA_ROW, :H_PAD].set(pad1(wa[:, 0], H_PAD))
    slab = slab.at[_WEFFS_ROW, :H_PAD].set(pad1(w_eff[:HIDDEN, 0], H_PAD))
    slab = slab.at[_WEFFM_ROW, :H_PAD].set(pad1(w_eff[HIDDEN:, 0], H_PAD))
    slab = slab.at[_SCAL_ROW, 0].set(ba[0])
    slab = slab.at[_SCAL_ROW, 1].set(b_eff[0])
    return slab


def graphsage_predictor(adj, dinv, node_feats, params, *, graphs_per_step=None):
    """Batched GraphSAGEPredictor forward: GB graphs fused per grid step."""
    B, N, _ = adj.shape

    # Group size: ~128 sublane rows per step (v5e MXU height; good on v6e/v7x too).  Pass
    # graphs_per_step=ceil(256/N) on v6e/v7x to fill the 256-row MXU.  Keep >= 2 grid steps so
    # both v7x TensorCores get work under dimension_semantics=("parallel",).
    if graphs_per_step is None:
        gb = max(1, min(B, max(1, 128 // N)))
    else:
        gb = max(1, min(B, graphs_per_step))
    while gb > 1 and pl.cdiv(B, gb) < 2:
        gb //= 2
    n_groups = pl.cdiv(B, gb)
    b_pad = n_groups * gb
    gbn = gb * N

    # Host prep: per-group block-diagonal, row-normalized adjacency (1/deg folded in while the
    # block-diagonal is assembled -- no separate norm_adj materialization), features kept 74-wide.
    # For very large groups this assembly would move into a VMEM scratch inside the kernel.
    norm = (adj * dinv).astype(jnp.float32)                                   # [B, N, N]
    feats = node_feats.astype(jnp.float32)                                    # [B, N, 74]
    if b_pad != B:
        pad = b_pad - B
        norm = jnp.concatenate([norm, jnp.zeros((pad, N, N), jnp.float32)], axis=0)
        feats = jnp.concatenate([feats, jnp.zeros((pad, N, IN_FEATS), jnp.float32)], axis=0)
    eye = jnp.eye(gb, dtype=jnp.float32)
    adj_bd = jnp.einsum("rgij,gh->rgihj", norm.reshape(n_groups, gb, N, N), eye)
    adj_bd = adj_bd.reshape(n_groups, gbn, gbn)                               # [nG, GB*N, GB*N]
    x_r = feats.reshape(n_groups, gbn, IN_FEATS)                              # [nG, GB*N, 74]
    wslab = _pack_params(params)

    out = pl.pallas_call(
        _make_kernel(gb, N),
        out_shape=jax.ShapeDtypeStruct((n_groups, gb, 1), jnp.float32),
        grid_spec=pltpu.PrefetchScalarGridSpec(
            num_scalar_prefetch=0,
            grid=(n_groups,),
            in_specs=[
                pl.BlockSpec((None, gbn, gbn), lambda g: (g, 0, 0)),       # block-diag adjacency
                pl.BlockSpec((None, gbn, IN_FEATS), lambda g: (g, 0, 0)),  # 74-wide features
                pl.BlockSpec(wslab.shape, lambda g: (0, 0)),               # resident weight slab
            ],
            out_specs=pl.BlockSpec((None, gb, 1), lambda g: (g, 0, 0)),
            scratch_shapes=[pltpu.VMEM((gbn, F_PAD), jnp.float32)],        # feature staging buf
        ),
        compiler_params=pltpu.CompilerParams(
            dimension_semantics=("parallel",),
        ),
    )(adj_bd, x_r, wslab)
    return out.reshape(b_pad, N_TASKS)[:B]


def _init_params(key):
    """Deterministic synthetic parameters in natural (unpadded) shapes."""
    ks = jax.random.split(key, 12)

    def lin_w(k, fan_in, fan_out):
        return jax.random.normal(k, (fan_in, fan_out), jnp.float32) / jnp.sqrt(fan_in)

    def lin_b(k, fan_out):
        return jax.random.normal(k, (fan_out,), jnp.float32) * 0.05

    ws1 = lin_w(ks[0], IN_FEATS, HIDDEN)
    wn1 = lin_w(ks[1], IN_FEATS, HIDDEN)
    b1 = lin_b(ks[2], HIDDEN)
    ws2 = lin_w(ks[3], HIDDEN, HIDDEN)
    wn2 = lin_w(ks[4], HIDDEN, HIDDEN)
    b2 = lin_b(ks[5], HIDDEN)
    wa = lin_w(ks[6], HIDDEN, 1)
    ba = lin_b(ks[7], 1)
    wp1 = lin_w(ks[8], 2 * HIDDEN, PRED_HIDDEN)
    bp1 = lin_b(ks[9], PRED_HIDDEN)
    wp2 = lin_w(ks[10], PRED_HIDDEN, N_TASKS)
    bp2 = lin_b(ks[11], N_TASKS)
    return (ws1, wn1, b1, ws2, wn2, b2, wa, ba, wp1, bp1, wp2, bp2)


def _reference(adj, dinv, x, params):
    """Pure-JAX reference (per graph, vmapped over the batch)."""
    ws1, wn1, b1, ws2, wn2, b2, wa, ba, wp1, bp1, wp2, bp2 = params

    def one(adj_g, dinv_g, x_g):
        hn = (adj_g @ x_g) * dinv_g
        h = jnp.maximum(x_g @ ws1 + hn @ wn1 + b1, 0.0)
        hn = (adj_g @ h) * dinv_g
        h = jnp.maximum(h @ ws2 + hn @ wn2 + b2, 0.0)
        w = jax.nn.sigmoid(h @ wa + ba)
        g = jnp.concatenate([jnp.sum(w * h, axis=0), jnp.max(h, axis=0)])
        z = g @ wp1 + bp1
        return z @ wp2 + bp2

    return jax.vmap(one)(adj, dinv, x)


if __name__ == "__main__":
    key = jax.random.PRNGKey(0)
    k_graph, k_feat, k_param = jax.random.split(key, 3)

    # Batch of synthetic molecular graphs: symmetric adjacency, no self loops.
    B, N = 16, 16                      # -> 2 grid steps of 8 graphs (128 sublane rows) each
    rand = jax.random.uniform(k_graph, (B, N, N))
    adj = ((rand + jnp.swapaxes(rand, -1, -2)) > 1.2).astype(jnp.float32)
    adj = adj * (1.0 - jnp.eye(N, dtype=jnp.float32))
    deg = jnp.sum(adj, axis=-1, keepdims=True)                       # in-degree per node
    dinv = jnp.where(deg > 0, 1.0 / jnp.maximum(deg, 1.0), 0.0).astype(jnp.float32)

    node_feats = jax.random.normal(k_feat, (B, N, IN_FEATS), jnp.float32)
    params = _init_params(k_param)

    out = graphsage_predictor(adj, dinv, node_feats, params)
    out = jax.block_until_ready(out)

    ref = _reference(adj, dinv, node_feats, params)
    assert out.shape == (B, N_TASKS), out.shape
    assert jnp.allclose(out, ref, atol=1e-4, rtol=1e-4), (out, ref)

    print("KERNEL_OK")
</pallas_src>

<mosaic_0001>
module attributes {stable_mosaic.version = 11 : i64} {
  func.func @kernel(%arg0: i32, %arg1: memref<1x128x128xf32, #tpu.memory_space<vmem>>, %arg2: memref<1x128x74xf32, #tpu.memory_space<vmem>>, %arg3: memref<264x256xf32, #tpu.memory_space<vmem>>, %arg4: memref<1x8x1xf32, #tpu.memory_space<vmem>>, %arg5: memref<128x128xf32, #tpu.memory_space<vmem>>) attributes {dimension_semantics = [#tpu.dimension_semantics<parallel>], iteration_bounds = array<i64: 2>, scalar_prefetch = 0 : i64, scratch_operands = 1 : i64, tpu.core_type = #tpu.core_type<tc>, window_params = [{transform_indices = @transform_0, window_bounds = array<i64: 1, 128, 128>}, {transform_indices = @transform_1, window_bounds = array<i64: 1, 128, 74>}, {pipeline_mode = #tpu.pipeline_mode<synchronous>, transform_indices = @transform_2, window_bounds = array<i64: 264, 256>}, {transform_indices = @transform_3, window_bounds = array<i64: 1, 8, 1>}]} {
    %cst = arith.constant 0.000000e+00 : f32
    %0 = vector.broadcast %cst : f32 to vector<128x128xf32>
    %c0 = arith.constant 0 : index
    %c0_0 = arith.constant 0 : index
    %1 = vector.load %arg5[%c0, %c0_0] : memref<128x128xf32, #tpu.memory_space<vmem>>, vector<128x128xf32>
    tpu.vector_store %arg5[%c0, %c0_0], %0 {strides = array<i32>} : memref<128x128xf32, #tpu.memory_space<vmem>>, vector<128x128xf32>,
    %c0_1 = arith.constant 0 : index
    %c0_2 = arith.constant 0 : index
    %c0_3 = arith.constant 0 : index
    %2 = vector.load %arg2[%c0_1, %c0_2, %c0_3] : memref<1x128x74xf32, #tpu.memory_space<vmem>>, vector<1x128x74xf32>
    %3 = vector.shape_cast %2 : vector<1x128x74xf32> to vector<128x74xf32>
    %c0_4 = arith.constant 0 : index
    %c0_5 = arith.constant 0 : index
    %4 = vector.load %arg5[%c0_4, %c0_5] : memref<128x128xf32, #tpu.memory_space<vmem>>, vector<128x74xf32>
    tpu.vector_store %arg5[%c0_4, %c0_5], %3 {strides = array<i32>} : memref<128x128xf32, #tpu.memory_space<vmem>>, vector<128x74xf32>,
    %c0_6 = arith.constant 0 : index
    %c0_7 = arith.constant 0 : index
    %5 = vector.load %arg5[%c0_6, %c0_7] : memref<128x128xf32, #tpu.memory_space<vmem>>, vector<128x128xf32>
    %c0_8 = arith.constant 0 : index
    %c0_9 = arith.constant 0 : index
    %c0_10 = arith.constant 0 : index
    %6 = vector.load %arg1[%c0_8, %c0_9, %c0_10] : memref<1x128x128xf32, #tpu.memory_space<vmem>>, vector<1x128x128xf32>
    %7 = vector.shape_cast %6 : vector<1x128x128xf32> to vector<128x128xf32>
    %c256 = arith.constant 256 : index
    %c0_11 = arith.constant 0 : index
    %8 = vector.load %arg3[%c256, %c0_11] : memref<264x256xf32, #tpu.memory_space<vmem>>, vector<1x128xf32>
    %c257 = arith.constant 257 : index
    %c0_12 = arith.constant 0 : index
    %9 = vector.load %arg3[%c257, %c0_12] : memref<264x256xf32, #tpu.memory_space<vmem>>, vector<1x128xf32>
    %c258 = arith.constant 258 : index
    %c0_13 = arith.constant 0 : index
    %10 = vector.load %arg3[%c258, %c0_13] : memref<264x256xf32, #tpu.memory_space<vmem>>, vector<1x128xf32>
    %c259 = arith.constant 259 : index
    %c0_14 = arith.constant 0 : index
    %11 = vector.load %arg3[%c259, %c0_14] : memref<264x256xf32, #tpu.memory_space<vmem>>, vector<1x128xf32>
    %c260 = arith.constant 260 : index
    %c0_15 = arith.constant 0 : index
    %12 = vector.load %arg3[%c260, %c0_15] : memref<264x256xf32, #tpu.memory_space<vmem>>, vector<1x128xf32>
    %c261 = arith.constant 261 : index
    %c0_16 = arith.constant 0 : index
    %13 = vector.load %arg3[%c261, %c0_16] : memref<264x256xf32, #tpu.memory_space<vmem>>, vector<1x1xf32>
    %c261_17 = arith.constant 261 : index
    %c1 = arith.constant 1 : index
    %14 = vector.load %arg3[%c261_17, %c1] : memref<264x256xf32, #tpu.memory_space<vmem>>, vector<1x1xf32>
    %c0_18 = arith.constant 0 : index
    %c0_19 = arith.constant 0 : index
    %15 = vector.load %arg3[%c0_18, %c0_19] : memref<264x256xf32, #tpu.memory_space<vmem>>, vector<128x256xf32>
    %cst_20 = arith.constant dense<0.000000e+00> : vector<128x256xf32>
    %16 = tpu.matmul %5, %15, %cst_20 {dimension_numbers = #tpu.dot_dimension_numbers<[1], [0], [0], [1], [0, 0, 1, 1], [], []>} : vector<128x128xf32>, vector<128x256xf32>, vector<128x256xf32> -> vector<128x256xf32>
    %17 = vector.extract_strided_slice %16 {offsets = [0, 0], sizes = [128, 128], strides = [1, 1]} : vector<128x256xf32> to vector<128x128xf32>
    %18 = vector.extract_strided_slice %16 {offsets = [0, 128], sizes = [128, 128], strides = [1, 1]} : vector<128x256xf32> to vector<128x128xf32>
    %cst_21 = arith.constant dense<0.000000e+00> : vector<128x128xf32>
    %19 = tpu.matmul %7, %18, %cst_21 {dimension_numbers = #tpu.dot_dimension_numbers<[1], [0], [0], [1], [0, 0, 1, 1], [], []>} : vector<128x128xf32>, vector<128x128xf32>, vector<128x128xf32> -> vector<128x128xf32>
    %20 = arith.addf %17, %19 : vector<128x128xf32>
    %21 = vector.broadcast %8 : vector<1x128xf32> to vector<128x128xf32>
    %22 = arith.addf %20, %21 : vector<128x128xf32>
    %cst_22 = arith.constant 0.000000e+00 : f32
    %23 = vector.broadcast %cst_22 : f32 to vector<128x128xf32>
    %24 = arith.maximumf %22, %23 : vector<128x128xf32>
    %c128 = arith.constant 128 : index
    %c0_23 = arith.constant 0 : index
    %25 = vector.load %arg3[%c128, %c0_23] : memref<264x256xf32, #tpu.memory_space<vmem>>, vector<128x256xf32>
    %cst_24 = arith.constant dense<0.000000e+00> : vector<128x256xf32>
    %26 = tpu.matmul %24, %25, %cst_24 {dimension_numbers = #tpu.dot_dimension_numbers<[1], [0], [0], [1], [0, 0, 1, 1], [], []>} : vector<128x128xf32>, vector<128x256xf32>, vector<128x256xf32> -> vector<128x256xf32>
    %27 = vector.extract_strided_slice %26 {offsets = [0, 0], sizes = [128, 128], strides = [1, 1]} : vector<128x256xf32> to vector<128x128xf32>
    %28 = vector.extract_strided_slice %26 {offsets = [0, 128], sizes = [128, 128], strides = [1, 1]} : vector<128x256xf32> to vector<128x128xf32>
    %cst_25 = arith.constant dense<0.000000e+00> : vector<128x128xf32>
    %29 = tpu.matmul %7, %28, %cst_25 {dimension_numbers = #tpu.dot_dimension_numbers<[1], [0], [0], [1], [0, 0, 1, 1], [], []>} : vector<128x128xf32>, vector<128x128xf32>, vector<128x128xf32> -> vector<128x128xf32>
    %30 = arith.addf %27, %29 : vector<128x128xf32>
    %31 = vector.broadcast %9 : vector<1x128xf32> to vector<128x128xf32>
    %32 = arith.addf %30, %31 : vector<128x128xf32>
    %cst_26 = arith.constant 0.000000e+00 : f32
    %33 = vector.broadcast %cst_26 : f32 to vector<128x128xf32>
    %34 = arith.maximumf %32, %33 : vector<128x128xf32>
    %35 = vector.broadcast %10 : vector<1x128xf32> to vector<128x128xf32>
    %36 = arith.mulf %34, %35 : vector<128x128xf32>
    %cst_27 = arith.constant dense<0.000000e+00> : vector<128xf32>
    %37 = vector.multi_reduction <add>, %36, %cst_27 [1] : vector<128x128xf32> to vector<128xf32>
    %38 = vector.shape_cast %37 : vector<128xf32> to vector<128x1xf32>
    %39 = vector.broadcast %13 : vector<1x1xf32> to vector<128x1xf32>
    %40 = arith.addf %38, %39 : vector<128x1xf32>
    %41 = arith.negf %40 : vector<128x1xf32>
    %42 = math.exp %41 : vector<128x1xf32>
    %cst_28 = arith.constant 1.000000e+00 : f32
    %43 = vector.broadcast %cst_28 : f32 to vector<128x1xf32>
    %44 = arith.addf %43, %42 : vector<128x1xf32>
    %45 = arith.divf %43, %44 : vector<128x1xf32>
    %46 = vector.broadcast %45 : vector<128x1xf32> to vector<128x128xf32>
    %47 = arith.mulf %46, %34 : vector<128x128xf32>
    %48 = vector.extract_strided_slice %47 {offsets = [0, 0], sizes = [16, 128], strides = [1, 1]} : vector<128x128xf32> to vector<16x128xf32>
    %cst_29 = arith.constant dense<0.000000e+00> : vector<128xf32>
    %49 = vector.multi_reduction <add>, %48, %cst_29 [0] : vector<16x128xf32> to vector<128xf32>
    %50 = vector.shape_cast %49 : vector<128xf32> to vector<1x128xf32>
    %51 = vector.extract_strided_slice %34 {offsets = [0, 0], sizes = [16, 128], strides = [1, 1]} : vector<128x128xf32> to vector<16x128xf32>
    %cst_30 = arith.constant dense<0xFF800000> : vector<128xf32>
    %52 = vector.multi_reduction <maximumf>, %51, %cst_30 [0] : vector<16x128xf32> to vector<128xf32>
    %53 = vector.shape_cast %52 : vector<128xf32> to vector<1x128xf32>
    %54 = arith.mulf %50, %11 : vector<1x128xf32>
    %55 = arith.mulf %53, %12 : vector<1x128xf32>
    %56 = arith.addf %54, %55 : vector<1x128xf32>
    %cst_31 = arith.constant dense<0.000000e+00> : vector<1xf32>
    %57 = vector.multi_reduction <add>, %56, %cst_31 [1] : vector<1x128xf32> to vector<1xf32>
    %58 = vector.shape_cast %57 : vector<1xf32> to vector<1x1xf32>
    %59 = arith.addf %58, %14 : vector<1x1xf32>
    %c0_32 = arith.constant 0 : index
    %c0_33 = arith.constant 0 : index
    %c0_34 = arith.constant 0 : index
    %60 = vector.load %arg4[%c0_32, %c0_33, %c0_34] : memref<1x8x1xf32, #tpu.memory_space<vmem>>, vector<1x1x1xf32>
    %61 = vector.shape_cast %60 : vector<1x1x1xf32> to vector<1x1xf32>
    %62 = vector.shape_cast %59 : vector<1x1xf32> to vector<1x1x1xf32>
    tpu.vector_store %arg4[%c0_32, %c0_33, %c0_34], %62 {strides = array<i32>} : memref<1x8x1xf32, #tpu.memory_space<vmem>>, vector<1x1x1xf32>,
    %63 = vector.extract_strided_slice %47 {offsets = [16, 0], sizes = [16, 128], strides = [1, 1]} : vector<128x128xf32> to vector<16x128xf32>
    %cst_35 = arith.constant dense<0.000000e+00> : vector<128xf32>
    %64 = vector.multi_reduction <add>, %63, %cst_35 [0] : vector<16x128xf32> to vector<128xf32>
    %65 = vector.shape_cast %64 : vector<128xf32> to vector<1x128xf32>
    %66 = vector.extract_strided_slice %34 {offsets = [16, 0], sizes = [16, 128], strides = [1, 1]} : vector<128x128xf32> to vector<16x128xf32>
    %cst_36 = arith.constant dense<0xFF800000> : vector<128xf32>
    %67 = vector.multi_reduction <maximumf>, %66, %cst_36 [0] : vector<16x128xf32> to vector<128xf32>
    %68 = vector.shape_cast %67 : vector<128xf32> to vector<1x128xf32>
    %69 = arith.mulf %65, %11 : vector<1x128xf32>
    %70 = arith.mulf %68, %12 : vector<1x128xf32>
    %71 = arith.addf %69, %70 : vector<1x128xf32>
    %cst_37 = arith.constant dense<0.000000e+00> : vector<1xf32>
    %72 = vector.multi_reduction <add>, %71, %cst_37 [1] : vector<1x128xf32> to vector<1xf32>
    %73 = vector.shape_cast %72 : vector<1xf32> to vector<1x1xf32>
    %74 = arith.addf %73, %14 : vector<1x1xf32>
    %c0_38 = arith.constant 0 : index
    %c1_39 = arith.constant 1 : index
    %c0_40 = arith.constant 0 : index
    %75 = vector.load %arg4[%c0_38, %c1_39, %c0_40] : memref<1x8x1xf32, #tpu.memory_space<vmem>>, vector<1x1x1xf32>
    %76 = vector.shape_cast %75 : vector<1x1x1xf32> to vector<1x1xf32>
    %77 = vector.shape_cast %74 : vector<1x1xf32> to vector<1x1x1xf32>
    tpu.vector_store %arg4[%c0_38, %c1_39, %c0_40], %77 {strides = array<i32>} : memref<1x8x1xf32, #tpu.memory_space<vmem>>, vector<1x1x1xf32>,
    %78 = vector.extract_strided_slice %47 {offsets = [32, 0], sizes = [16, 128], strides = [1, 1]} : vector<128x128xf32> to vector<16x128xf32>
    %cst_41 = arith.constant dense<0.000000e+00> : vector<128xf32>
    %79 = vector.multi_reduction <add>, %78, %cst_41 [0] : vector<16x128xf32> to vector<128xf32>
    %80 = vector.shape_cast %79 : vector<128xf32> to vector<1x128xf32>
    %81 = vector.extract_strided_slice %34 {offsets = [32, 0], sizes = [16, 128], strides = [1, 1]} : vector<128x128xf32> to vector<16x128xf32>
    %cst_42 = arith.constant dense<0xFF800000> : vector<128xf32>
    %82 = vector.multi_reduction <maximumf>, %81, %cst_42 [0] : vector<16x128xf32> to vector<128xf32>
    %83 = vector.shape_cast %82 : vector<128xf32> to vector<1x128xf32>
    %84 = arith.mulf %80, %11 : vector<1x128xf32>
    %85 = arith.mulf %83, %12 : vector<1x128xf32>
    %86 = arith.addf %84, %85 : vector<1x128xf32>
    %cst_43 = arith.constant dense<0.000000e+00> : vector<1xf32>
    %87 = vector.multi_reduction <add>, %86, %cst_43 [1] : vector<1x128xf32> to vector<1xf32>
    %88 = vector.shape_cast %87 : vector<1xf32> to vector<1x1xf32>
    %89 = arith.addf %88, %14 : vector<1x1xf32>
    %c0_44 = arith.constant 0 : index
    %c2 = arith.constant 2 : index
    %c0_45 = arith.constant 0 : index
    %90 = vector.load %arg4[%c0_44, %c2, %c0_45] : memref<1x8x1xf32, #tpu.memory_space<vmem>>, vector<1x1x1xf32>
    %91 = vector.shape_cast %90 : vector<1x1x1xf32> to vector<1x1xf32>
    %92 = vector.shape_cast %89 : vector<1x1xf32> to vector<1x1x1xf32>
    tpu.vector_store %arg4[%c0_44, %c2, %c0_45], %92 {strides = array<i32>} : memref<1x8x1xf32, #tpu.memory_space<vmem>>, vector<1x1x1xf32>,
    %93 = vector.extract_strided_slice %47 {offsets = [48, 0], sizes = [16, 128], strides = [1, 1]} : vector<128x128xf32> to vector<16x128xf32>
    %cst_46 = arith.constant dense<0.000000e+00> : vector<128xf32>
    %94 = vector.multi_reduction <add>, %93, %cst_46 [0] : vector<16x128xf32> to vector<128xf32>
    %95 = vector.shape_cast %94 : vector<128xf32> to vector<1x128xf32>
    %96 = vector.extract_strided_slice %34 {offsets = [48, 0], sizes = [16, 128], strides = [1, 1]} : vector<128x128xf32> to vector<16x128xf32>
    %cst_47 = arith.constant dense<0xFF800000> : vector<128xf32>
    %97 = vector.multi_reduction <maximumf>, %96, %cst_47 [0] : vector<16x128xf32> to vector<128xf32>
    %98 = vector.shape_cast %97 : vector<128xf32> to vector<1x128xf32>
    %99 = arith.mulf %95, %11 : vector<1x128xf32>
    %100 = arith.mulf %98, %12 : vector<1x128xf32>
    %101 = arith.addf %99, %100 : vector<1x128xf32>
    %cst_48 = arith.constant dense<0.000000e+00> : vector<1xf32>
    %102 = vector.multi_reduction <add>, %101, %cst_48 [1] : vector<1x128xf32> to vector<1xf32>
    %103 = vector.shape_cast %102 : vector<1xf32> to vector<1x1xf32>
    %104 = arith.addf %103, %14 : vector<1x1xf32>
    %c0_49 = arith.constant 0 : index
    %c3 = arith.constant 3 : index
    %c0_50 = arith.constant 0 : index
    %105 = vector.load %arg4[%c0_49, %c3, %c0_50] : memref<1x8x1xf32, #tpu.memory_space<vmem>>, vector<1x1x1xf32>
    %106 = vector.shape_cast %105 : vector<1x1x1xf32> to vector<1x1xf32>
    %107 = vector.shape_cast %104 : vector<1x1xf32> to vector<1x1x1xf32>
    tpu.vector_store %arg4[%c0_49, %c3, %c0_50], %107 {strides = array<i32>} : memref<1x8x1xf32, #tpu.memory_space<vmem>>, vector<1x1x1xf32>,
    %108 = vector.extract_strided_slice %47 {offsets = [64, 0], sizes = [16, 128], strides = [1, 1]} : vector<128x128xf32> to vector<16x128xf32>
    %cst_51 = arith.constant dense<0.000000e+00> : vector<128xf32>
    %109 = vector.multi_reduction <add>, %108, %cst_51 [0] : vector<16x128xf32> to vector<128xf32>
    %110 = vector.shape_cast %109 : vector<128xf32> to vector<1x128xf32>
    %111 = vector.extract_strided_slice %34 {offsets = [64, 0], sizes = [16, 128], strides = [1, 1]} : vector<128x128xf32> to vector<16x128xf32>
    %cst_52 = arith.constant dense<0xFF800000> : vector<128xf32>
    %112 = vector.multi_reduction <maximumf>, %111, %cst_52 [0] : vector<16x128xf32> to vector<128xf32>
    %113 = vector.shape_cast %112 : vector<128xf32> to vector<1x128xf32>
    %114 = arith.mulf %110, %11 : vector<1x128xf32>
    %115 = arith.mulf %113, %12 : vector<1x128xf32>
    %116 = arith.addf %114, %115 : vector<1x128xf32>
    %cst_53 = arith.constant dense<0.000000e+00> : vector<1xf32>
    %117 = vector.multi_reduction <add>, %116, %cst_53 [1] : vector<1x128xf32> to vector<1xf32>
    %118 = vector.shape_cast %117 : vector<1xf32> to vector<1x1xf32>
    %119 = arith.addf %118, %14 : vector<1x1xf32>
    %c0_54 = arith.constant 0 : index
    %c4 = arith.constant 4 : index
    %c0_55 = arith.constant 0 : index
    %120 = vector.load %arg4[%c0_54, %c4, %c0_55] : memref<1x8x1xf32, #tpu.memory_space<vmem>>, vector<1x1x1xf32>
    %121 = vector.shape_cast %120 : vector<1x1x1xf32> to vector<1x1xf32>
    %122 = vector.shape_cast %119 : vector<1x1xf32> to vector<1x1x1xf32>
    tpu.vector_store %arg4[%c0_54, %c4, %c0_55], %122 {strides = array<i32>} : memref<1x8x1xf32, #tpu.memory_space<vmem>>, vector<1x1x1xf32>,
    %123 = vector.extract_strided_slice %47 {offsets = [80, 0], sizes = [16, 128], strides = [1, 1]} : vector<128x128xf32> to vector<16x128xf32>
    %cst_56 = arith.constant dense<0.000000e+00> : vector<128xf32>
    %124 = vector.multi_reduction <add>, %123, %cst_56 [0] : vector<16x128xf32> to vector<128xf32>
    %125 = vector.shape_cast %124 : vector<128xf32> to vector<1x128xf32>
    %126 = vector.extract_strided_slice %34 {offsets = [80, 0], sizes = [16, 128], strides = [1, 1]} : vector<128x128xf32> to vector<16x128xf32>
    %cst_57 = arith.constant dense<0xFF800000> : vector<128xf32>
    %127 = vector.multi_reduction <maximumf>, %126, %cst_57 [0] : vector<16x128xf32> to vector<128xf32>
    %128 = vector.shape_cast %127 : vector<128xf32> to vector<1x128xf32>
    %129 = arith.mulf %125, %11 : vector<1x128xf32>
    %130 = arith.mulf %128, %12 : vector<1x128xf32>
    %131 = arith.addf %129, %130 : vector<1x128xf32>
    %cst_58 = arith.constant dense<0.000000e+00> : vector<1xf32>
    %132 = vector.multi_reduction <add>, %131, %cst_58 [1] : vector<1x128xf32> to vector<1xf32>
    %133 = vector.shape_cast %132 : vector<1xf32> to vector<1x1xf32>
    %134 = arith.addf %133, %14 : vector<1x1xf32>
    %c0_59 = arith.constant 0 : index
    %c5 = arith.constant 5 : index
    %c0_60 = arith.constant 0 : index
    %135 = vector.load %arg4[%c0_59, %c5, %c0_60] : memref<1x8x1xf32, #tpu.memory_space<vmem>>, vector<1x1x1xf32>
    %136 = vector.shape_cast %135 : vector<1x1x1xf32> to vector<1x1xf32>
    %137 = vector.shape_cast %134 : vector<1x1xf32> to vector<1x1x1xf32>
    tpu.vector_store %arg4[%c0_59, %c5, %c0_60], %137 {strides = array<i32>} : memref<1x8x1xf32, #tpu.memory_space<vmem>>, vector<1x1x1xf32>,
    %138 = vector.extract_strided_slice %47 {offsets = [96, 0], sizes = [16, 128], strides = [1, 1]} : vector<128x128xf32> to vector<16x128xf32>
    %cst_61 = arith.constant dense<0.000000e+00> : vector<128xf32>
    %139 = vector.multi_reduction <add>, %138, %cst_61 [0] : vector<16x128xf32> to vector<128xf32>
    %140 = vector.shape_cast %139 : vector<128xf32> to vector<1x128xf32>
    %141 = vector.extract_strided_slice %34 {offsets = [96, 0], sizes = [16, 128], strides = [1, 1]} : vector<128x128xf32> to vector<16x128xf32>
    %cst_62 = arith.constant dense<0xFF800000> : vector<128xf32>
    %142 = vector.multi_reduction <maximumf>, %141, %cst_62 [0] : vector<16x128xf32> to vector<128xf32>
    %143 = vector.shape_cast %142 : vector<128xf32> to vector<1x128xf32>
    %144 = arith.mulf %140, %11 : vector<1x128xf32>
    %145 = arith.mulf %143, %12 : vector<1x128xf32>
    %146 = arith.addf %144, %145 : vector<1x128xf32>
    %cst_63 = arith.constant dense<0.000000e+00> : vector<1xf32>
    %147 = vector.multi_reduction <add>, %146, %cst_63 [1] : vector<1x128xf32> to vector<1xf32>
    %148 = vector.shape_cast %147 : vector<1xf32> to vector<1x1xf32>
    %149 = arith.addf %148, %14 : vector<1x1xf32>
    %c0_64 = arith.constant 0 : index
    %c6 = arith.constant 6 : index
    %c0_65 = arith.constant 0 : index
    %150 = vector.load %arg4[%c0_64, %c6, %c0_65] : memref<1x8x1xf32, #tpu.memory_space<vmem>>, vector<1x1x1xf32>
    %151 = vector.shape_cast %150 : vector<1x1x1xf32> to vector<1x1xf32>
    %152 = vector.shape_cast %149 : vector<1x1xf32> to vector<1x1x1xf32>
    tpu.vector_store %arg4[%c0_64, %c6, %c0_65], %152 {strides = array<i32>} : memref<1x8x1xf32, #tpu.memory_space<vmem>>, vector<1x1x1xf32>,
    %153 = vector.extract_strided_slice %47 {offsets = [112, 0], sizes = [16, 128], strides = [1, 1]} : vector<128x128xf32> to vector<16x128xf32>
    %cst_66 = arith.constant dense<0.000000e+00> : vector<128xf32>
    %154 = vector.multi_reduction <add>, %153, %cst_66 [0] : vector<16x128xf32> to vector<128xf32>
    %155 = vector.shape_cast %154 : vector<128xf32> to vector<1x128xf32>
    %156 = vector.extract_strided_slice %34 {offsets = [112, 0], sizes = [16, 128], strides = [1, 1]} : vector<128x128xf32> to vector<16x128xf32>
    %cst_67 = arith.constant dense<0xFF800000> : vector<128xf32>
    %157 = vector.multi_reduction <maximumf>, %156, %cst_67 [0] : vector<16x128xf32> to vector<128xf32>
    %158 = vector.shape_cast %157 : vector<128xf32> to vector<1x128xf32>
    %159 = arith.mulf %155, %11 : vector<1x128xf32>
    %160 = arith.mulf %158, %12 : vector<1x128xf32>
    %161 = arith.addf %159, %160 : vector<1x128xf32>
    %cst_68 = arith.constant dense<0.000000e+00> : vector<1xf32>
    %162 = vector.multi_reduction <add>, %161, %cst_68 [1] : vector<1x128xf32> to vector<1xf32>
    %163 = vector.shape_cast %162 : vector<1xf32> to vector<1x1xf32>
    %164 = arith.addf %163, %14 : vector<1x1xf32>
    %c0_69 = arith.constant 0 : index
    %c7 = arith.constant 7 : index
    %c0_70 = arith.constant 0 : index
    %165 = vector.load %arg4[%c0_69, %c7, %c0_70] : memref<1x8x1xf32, #tpu.memory_space<vmem>>, vector<1x1x1xf32>
    %166 = vector.shape_cast %165 : vector<1x1x1xf32> to vector<1x1xf32>
    %167 = vector.shape_cast %164 : vector<1x1xf32> to vector<1x1x1xf32>
    tpu.vector_store %arg4[%c0_69, %c7, %c0_70], %167 {strides = array<i32>} : memref<1x8x1xf32, #tpu.memory_space<vmem>>, vector<1x1x1xf32>,
    return
  }
  func.func @transform_0(%arg0: i32) -> (i32, i32, i32) {
    %c0_i32 = arith.constant 0 : i32
    %c0_i32_0 = arith.constant 0 : i32
    %c0_i32_1 = arith.constant 0 : i32
    return %arg0, %c0_i32, %c0_i32_0 : i32, i32, i32
  }
  func.func @transform_1(%arg0: i32) -> (i32, i32, i32) {
    %c0_i32 = arith.constant 0 : i32
    %c0_i32_0 = arith.constant 0 : i32
    %c0_i32_1 = arith.constant 0 : i32
    return %arg0, %c0_i32, %c0_i32_0 : i32, i32, i32
  }
  func.func @transform_2(%arg0: i32) -> (i32, i32) {
    %c0_i32 = arith.constant 0 : i32
    %c0_i32_0 = arith.constant 0 : i32
    %c0_i32_1 = arith.constant 0 : i32
    return %c0_i32, %c0_i32_0 : i32, i32
  }
  func.func @transform_3(%arg0: i32) -> (i32, i32, i32) {
    %c0_i32 = arith.constant 0 : i32
    %c0_i32_0 = arith.constant 0 : i32
    %c0_i32_1 = arith.constant 0 : i32
    return %arg0, %c0_i32, %c0_i32_0 : i32, i32, i32
  }
}

</mosaic_0001>

<llo_original>
// kernel: tpu_custom_call.1
$region0: #{tpu_custom_call.1}
  #allocation0 [shape = 'u32[]', space=smem, size = 0x4, offset = 0x4, fixed_abs, tag = 'smem constant byte address 0x4 - core index']
  #allocation1 [shape = 'u32[144,128]{1,0:T(1,128)}', space=vmem, size = 0x12000, scoped, tag = 'internal scratch']
  #allocation2 [shape = 'f32[128,128]{1,0:T(8,128)}', space=vmem, size = 0x10000, scoped, tag = 'scratch operand']
  %s0 = inlined_call_operand.vmem [shape: f32[2,128,128], index: 0, kind: input, shape index: {}]
  %s1 = inlined_call_operand.vmem [shape: f32[2,128,74], index: 1, kind: input, shape index: {}]
  %s2 = inlined_call_operand.hbm [shape: f32[264,256], index: 2, kind: input, shape index: {}]
  %s3 = inlined_call_operand.vmem [shape: f32[2,8,1], index: 3, kind: output, shape index: {}]
  %s4 = sld [smem:[#allocation0]]
  $region49: #{tpu_custom_call.1} parent=0
    _
  %s6 = ssub.s32 1, %s4
  %s7 = scalar_select 0, %s6, %s4
  $region1: #{tpu_custom_call.1} parent=0
    #allocation3 [shape = 'u8[270336]{0}', space=vmem, size = 0x42000, scoped, tag = 'input window, operand 2, single buffered']
    #allocation4 [shape = 's32[2]{0}', space=sflag, size = 0x8, scoped, tag = 'scoped memory for tpu_custom_call.1']
    %8 = vsyncpa [#allocation4], 0
    loop: start=0, step=1, limit=4
    $region2: #{tpu_custom_call.1} parent=1 // loop_pre_header
      _
    $region3: #{tpu_custom_call.1} parent=1 // loop_header
      %s10 = sphi 0, %s14
      %p11 = scmp.ge.s32.totalorder %s10, 4
      %s20 = sphi 0, %s22
      %s23 = sphi 0, %s20
      %s24 = sphi 0, %s23
      %s40 = sphi 0, %s24
      %s46 = sphi 0, %s48
      %s49 = sphi 0, %s46
      %s50 = sphi 0, %s49
      %s66 = sphi 0, %s50
      %s70 = sphi 0, %s70
      %s72 = sphi 0, %s70
      %s73 = sphi 0, %s72
      %s87 = sphi 0, %s73
      %s93 = sphi 0, %s95
      %s96 = sphi 0, %s93
      %s97 = sphi 0, %s96
      %s113 = sphi 0, %s97
    $region4: #{tpu_custom_call.1} parent=1 // loop_header_branch
      %13 = sbr.rel (%p11) target = $region8
    $region5: #{tpu_custom_call.1} parent=1 // loop_body
      %s15 = ssub.s32 %s10, 1
      %s16 = ssub.s32 %s10, 2
      %s17 = sadd.s32 %s10, 1
      %s18 = ssub.s32 %s10, %s17
      %p19 = scmp.eq.s32.totalorder %s18, 0
      %s21 = sadd.s32 %s20, 1
      %s22 = scalar_select %p19, %s20, %s21
      %p25 = pneg %p19
      %p26 = scmp.eq.s32.totalorder %s10, 1
      %p27 = por %p25, %p26
      %p28 = scmp.ne.s32.totalorder %s20, %s23
      %p29 = scmp.eq.s32.totalorder %s10, 0
      %p30 = por %p28, %p29
      %p31 = scmp.ne.s32.totalorder %s20, %s23
      %p32 = scmp.eq.s32.totalorder %s15, 1
      %p33 = por %p31, %p32
      %p34 = scmp.ne.s32.totalorder %s23, %s24
      %p35 = scmp.eq.s32.totalorder %s15, 0
      %p36 = por %p34, %p35
      %p37 = scmp.ne.s32.totalorder %s23, %s24
      %p38 = scmp.eq.s32.totalorder %s16, 1
      %p39 = por %p37, %p38
      %p41 = scmp.ne.s32.totalorder %s24, %s40
      %p42 = scmp.eq.s32.totalorder %s16, 0
      %p43 = por %p41, %p42
      %s44 = ssub.s32 %s10, %s17
      %p45 = scmp.eq.s32.totalorder %s44, 0
      %s47 = sadd.s32 %s46, 1
      %s48 = scalar_select %p45, %s46, %s47
      %p51 = pneg %p45
      %p52 = scmp.eq.s32.totalorder %s10, 1
      %p53 = por %p51, %p52
      %p54 = scmp.ne.s32.totalorder %s46, %s49
      %p55 = scmp.eq.s32.totalorder %s10, 0
      %p56 = por %p54, %p55
      %p57 = scmp.ne.s32.totalorder %s46, %s49
      %p58 = scmp.eq.s32.totalorder %s15, 1
      %p59 = por %p57, %p58
      %p60 = scmp.ne.s32.totalorder %s49, %s50
      %p61 = scmp.eq.s32.totalorder %s15, 0
      %p62 = por %p60, %p61
      %p63 = scmp.ne.s32.totalorder %s49, %s50
      %p64 = scmp.eq.s32.totalorder %s16, 1
      %p65 = por %p63, %p64
      %p67 = scmp.ne.s32.totalorder %s50, %s66
      %p68 = scmp.eq.s32.totalorder %s16, 0
      %p69 = por %p67, %p68
      %s71 = sadd.s32 %s70, 1
      %p74 = scmp.eq.s32.totalorder %s10, 1
      %p75 = scmp.ne.s32.totalorder %s70, %s72
      %p76 = scmp.eq.s32.totalorder %s10, 0
      %p77 = por %p75, %p76
      %p78 = scmp.ne.s32.totalorder %s70, %s72
      %p79 = scmp.eq.s32.totalorder %s15, 1
      %p80 = por %p78, %p79
      %p81 = scmp.ne.s32.totalorder %s72, %s73
      %p82 = scmp.eq.s32.totalorder %s15, 0
      %p83 = por %p81, %p82
      %p84 = scmp.ne.s32.totalorder %s72, %s73
      %p85 = scmp.eq.s32.totalorder %s16, 1
      %p86 = por %p84, %p85
      %p88 = scmp.ne.s32.totalorder %s73, %s87
      %p89 = scmp.eq.s32.totalorder %s16, 0
      %p90 = por %p88, %p89
      %s91 = ssub.s32 %s10, %s17
      %p92 = scmp.eq.s32.totalorder %s91, 0
      %s94 = sadd.s32 %s93, 1
      %s95 = scalar_select %p92, %s93, %s94
      %p98 = pneg %p92
      %p99 = scmp.eq.s32.totalorder %s10, 1
      %p100 = por %p98, %p99
      %p101 = scmp.ne.s32.totalorder %s93, %s96
      %p102 = scmp.eq.s32.totalorder %s10, 0
      %p103 = por %p101, %p102
      %p104 = scmp.ne.s32.totalorder %s93, %s96
      %p105 = scmp.eq.s32.totalorder %s15, 1
      %p106 = por %p104, %p105
      %p107 = scmp.ne.s32.totalorder %s96, %s97
      %p108 = scmp.eq.s32.totalorder %s15, 0
      %p109 = por %p107, %p108
      %p110 = scmp.ne.s32.totalorder %s96, %s97
      %p111 = scmp.eq.s32.totalorder %s16, 1
      %p112 = por %p110, %p111
      %p114 = scmp.ne.s32.totalorder %s97, %s113
      %p115 = scmp.eq.s32.totalorder %s16, 0
      %p116 = por %p114, %p115
      %p117 = scmp.le.s32.totalorder 1, %s10
      %p118 = scmp.lt.s32.totalorder %s10, 3
      %p119 = pnand %p117, %p118
      %p120 = pneg %p119
      // Predicated region
      $region9: #{tpu_custom_call.1} parent=5 // pred_check
        _
      $region10: #{tpu_custom_call.1} parent=5 // pred_check_branch
        %122 = sbr.rel (%p119) target = $region12
      $region11: #{tpu_custom_call.1} parent=5 // pred_region
        %s123 = ssub.s32 %s10, 1
        // Predicated region
        $region13: #{tpu_custom_call.1} parent=11 // pred_check
          %p124 = pneg %p83
        $region14: #{tpu_custom_call.1} parent=11 // pred_check_branch
          %126 = sbr.rel (%p124) target = $region16
        $region15: #{tpu_custom_call.1} parent=11 // pred_region
          %s128 = ssub.s32 8448, 8448
          %129 = vsyncadd [#allocation4], %s128
          %s130 = sshll.u32 [#allocation3], 4
          %s131 = int_to_ptr.vmem [resolvable:$true] %s130
          %136 = dma.hbm_to_vmem [thread:$0]  %s2, 8448, %s131, [#allocation4], 256, 256, 16
        $region16: #{tpu_custom_call.1} parent=11 // pred_fallthru
          _
      $region12: #{tpu_custom_call.1} parent=5 // pred_fallthru
        _
      %p137 = scmp.lt.s32.totalorder %s10, 2
      // Predicated region
      $region17: #{tpu_custom_call.1} parent=5 // pred_check
        %p138 = pneg %p137
      $region18: #{tpu_custom_call.1} parent=5 // pred_check_branch
        %140 = sbr.rel (%p138) target = $region20
      $region19: #{tpu_custom_call.1} parent=5 // pred_region
        // Predicated region
        $region21: #{tpu_custom_call.1} parent=19 // pred_check
          %p141 = pneg %p30
        $region22: #{tpu_custom_call.1} parent=19 // pred_check_branch
          %143 = sbr.rel (%p141) target = $region24
        $region23: #{tpu_custom_call.1} parent=19 // pred_region
          %p144 = scmp.lt.s32.totalorder %s10, 1
          %s145 = scalar_select %p144, %s10, 1
          %s146 = smul.addr %s145, 16
          %s147 = smul.addr %s146, 8
          %s148 = scalar_lea.vmem %s0, %s147
        $region24: #{tpu_custom_call.1} parent=19 // pred_fallthru
          _
        // Predicated region
        $region25: #{tpu_custom_call.1} parent=19 // pred_check
          %p149 = pneg %p56
        $region26: #{tpu_custom_call.1} parent=19 // pred_check_branch
          %151 = sbr.rel (%p149) target = $region28
        $region27: #{tpu_custom_call.1} parent=19 // pred_region
          %p152 = scmp.lt.s32.totalorder %s10, 1
          %s153 = scalar_select %p152, %s10, 1
          %s154 = smul.addr %s153, 16
          %s155 = smul.addr %s154, 8
          %s156 = scalar_lea.vmem %s1, %s155
        $region28: #{tpu_custom_call.1} parent=19 // pred_fallthru
          _
      $region20: #{tpu_custom_call.1} parent=5 // pred_fallthru
        _
      %p157 = scmp.le.s32.totalorder 1, %s10
      %p158 = scmp.lt.s32.totalorder %s10, 3
      %p159 = pnand %p157, %p158
      %p160 = pneg %p159
      // Predicated region
      $region29: #{tpu_custom_call.1} parent=5 // pred_check
        _
      $region30: #{tpu_custom_call.1} parent=5 // pred_check_branch
        %162 = sbr.rel (%p159) target = $region32
      $region31: #{tpu_custom_call.1} parent=5 // pred_region
        %s163 = ssub.s32 %s10, 1
        // Predicated region
        $region33: #{tpu_custom_call.1} parent=31 // pred_check
          %p164 = pneg %p83
        $region34: #{tpu_custom_call.1} parent=31 // pred_check_branch
          %166 = sbr.rel (%p164) target = $region36
        $region35: #{tpu_custom_call.1} parent=31 // pred_region
          %167 = dma.done [#allocation4], 8448
        $region36: #{tpu_custom_call.1} parent=31 // pred_fallthru
          _
        %p168 = scmp.lt.s32.totalorder %s15, 1
        %s169 = scalar_select %p168, %s15, 1
        %s170 = smul.addr %s169, 16
        %s171 = smul.addr %s170, 8
        %s172 = scalar_lea.vmem %s0, %s171
        %p173 = pneg %p36
        %p174 = pneg %p33
        %p175 = scmp.lt.s32.totalorder %s15, 1
        %s176 = scalar_select %p175, %s15, 1
        %s177 = smul.addr %s176, 16
        %s178 = smul.addr %s177, 8
        %s179 = scalar_lea.vmem %s1, %s178
        %p180 = pneg %p62
        %p181 = pneg %p59
        %p182 = pneg %p83
        %p183 = pneg %p80
        %p184 = pneg %p109
        %p185 = pneg %p106
        %p186 = scmp.lt.s32.totalorder %s15, 1
        %s187 = scalar_select %p186, %s15, 1
        %s188 = smul.addr %s187, 8
        %s189 = scalar_lea.vmem %s3, %s188
        %p190 = scmp.lt.s32.totalorder %s15, 1
        %s191 = scalar_select %p190, %s15, 1
        %s192 = smul.addr %s191, 16
        %s193 = smul.addr %s192, 8
        %s194 = scalar_lea.vmem %s0, %s193
        %p195 = scmp.lt.s32.totalorder %s15, 1
        %s196 = scalar_select %p195, %s15, 1
        %s197 = smul.addr %s196, 16
        %s198 = smul.addr %s197, 8
        %s199 = scalar_lea.vmem %s1, %s198
        %p200 = scmp.lt.s32.totalorder %s15, 1
        %s201 = scalar_select %p200, %s15, 1
        %s202 = smul.addr %s201, 8
        %s203 = scalar_lea.vmem %s3, %s202
        %204 = vst [vmem:[#allocation2] sm:$0xff] 0.0
        %205 = vst [vmem:[#allocation2 + $0x8] sm:$0xff] 0.0
        %206 = vst [vmem:[#allocation2 + $0x10] sm:$0xff] 0.0
        %207 = vst [vmem:[#allocation2 + $0x18] sm:$0xff] 0.0
        %208 = vst [vmem:[#allocation2 + $0x20] sm:$0xff] 0.0
        %209 = vst [vmem:[#allocation2 + $0x28] sm:$0xff] 0.0
        %210 = vst [vmem:[#allocation2 + $0x30] sm:$0xff] 0.0
        %211 = vst [vmem:[#allocation2 + $0x38] sm:$0xff] 0.0
        %212 = vst [vmem:[#allocation2 + $0x40] sm:$0xff] 0.0
        %213 = vst [vmem:[#allocation2 + $0x48] sm:$0xff] 0.0
        %214 = vst [vmem:[#allocation2 + $0x50] sm:$0xff] 0.0
        %215 = vst [vmem:[#allocation2 + $0x58] sm:$0xff] 0.0
        %216 = vst [vmem:[#allocation2 + $0x60] sm:$0xff] 0.0
        %217 = vst [vmem:[#allocation2 + $0x68] sm:$0xff] 0.0
        %218 = vst [vmem:[#allocation2 + $0x70] sm:$0xff] 0.0
        %219 = vst [vmem:[#allocation2 + $0x78] sm:$0xff] 0.0
        %v220 = vld [vmem:[%s199] sm:$0xff]
        %v221 = vld [vmem:[%s199 + $0x8] sm:$0xff]
        %v222 = vld [vmem:[%s199 + $0x10] sm:$0xff]
        %v223 = vld [vmem:[%s199 + $0x18] sm:$0xff]
        %v224 = vld [vmem:[%s199 + $0x20] sm:$0xff]
        %v225 = vld [vmem:[%s199 + $0x28] sm:$0xff]
        %v226 = vld [vmem:[%s199 + $0x30] sm:$0xff]
        %v227 = vld [vmem:[%s199 + $0x38] sm:$0xff]
        %v228 = vld [vmem:[%s199 + $0x40] sm:$0xff]
        %v229 = vld [vmem:[%s199 + $0x48] sm:$0xff]
        %v230 = vld [vmem:[%s199 + $0x50] sm:$0xff]
        %v231 = vld [vmem:[%s199 + $0x58] sm:$0xff]
        %v232 = vld [vmem:[%s199 + $0x60] sm:$0xff]
        %v233 = vld [vmem:[%s199 + $0x68] sm:$0xff]
        %v234 = vld [vmem:[%s199 + $0x70] sm:$0xff]
        %v235 = vld [vmem:[%s199 + $0x78] sm:$0xff]
        %vm236 = vcmask 605184
        %237 = vst.msk [vmem:[#allocation2] sm:$0xff] %vm236, %v220
        %238 = vst.msk [vmem:[#allocation2 + $0x8] sm:$0xff] %vm236, %v221
        %239 = vst.msk [vmem:[#allocation2 + $0x10] sm:$0xff] %vm236, %v222
        %240 = vst.msk [vmem:[#allocation2 + $0x18] sm:$0xff] %vm236, %v223
        %241 = vst.msk [vmem:[#allocation2 + $0x20] sm:$0xff] %vm236, %v224
        %242 = vst.msk [vmem:[#allocation2 + $0x28] sm:$0xff] %vm236, %v225
        %243 = vst.msk [vmem:[#allocation2 + $0x30] sm:$0xff] %vm236, %v226
        %244 = vst.msk [vmem:[#allocation2 + $0x38] sm:$0xff] %vm236, %v227
        %245 = vst.msk [vmem:[#allocation2 + $0x40] sm:$0xff] %vm236, %v228
        %246 = vst.msk [vmem:[#allocation2 + $0x48] sm:$0xff] %vm236, %v229
        %247 = vst.msk [vmem:[#allocation2 + $0x50] sm:$0xff] %vm236, %v230
        %248 = vst.msk [vmem:[#allocation2 + $0x58] sm:$0xff] %vm236, %v231
        %249 = vst.msk [vmem:[#allocation2 + $0x60] sm:$0xff] %vm236, %v232
        %250 = vst.msk [vmem:[#allocation2 + $0x68] sm:$0xff] %vm236, %v233
        %251 = vst.msk [vmem:[#allocation2 + $0x70] sm:$0xff] %vm236, %v234
        %252 = vst.msk [vmem:[#allocation2 + $0x78] sm:$0xff] %vm236, %v235
        %v253 = vld [vmem:[#allocation2] sm:$0xff]
        %v254 = vld [vmem:[#allocation2 + $0x8] sm:$0xff]
        %v255 = vld [vmem:[#allocation2 + $0x10] sm:$0xff]
        %v256 = vld [vmem:[#allocation2 + $0x18] sm:$0xff]
        %v257 = vld [vmem:[#allocation2 + $0x20] sm:$0xff]
        %v258 = vld [vmem:[#allocation2 + $0x28] sm:$0xff]
        %v259 = vld [vmem:[#allocation2 + $0x30] sm:$0xff]
        %v260 = vld [vmem:[#allocation2 + $0x38] sm:$0xff]
        %v261 = vld [vmem:[#allocation2 + $0x40] sm:$0xff]
        %v262 = vld [vmem:[#allocation2 + $0x48] sm:$0xff]
        %v263 = vld [vmem:[#allocation2 + $0x50] sm:$0xff]
        %v264 = vld [vmem:[#allocation2 + $0x58] sm:$0xff]
        %v265 = vld [vmem:[#allocation2 + $0x60] sm:$0xff]
        %v266 = vld [vmem:[#allocation2 + $0x68] sm:$0xff]
        %v267 = vld [vmem:[#allocation2 + $0x70] sm:$0xff]
        %v268 = vld [vmem:[#allocation2 + $0x78] sm:$0xff]
        %v269 = vld [vmem:[%s194] sm:$0xff]
        %v270 = vld [vmem:[%s194 + $0x8] sm:$0xff]
        %v271 = vld [vmem:[%s194 + $0x10] sm:$0xff]
        %v272 = vld [vmem:[%s194 + $0x18] sm:$0xff]
        %v273 = vld [vmem:[%s194 + $0x20] sm:$0xff]
        %v274 = vld [vmem:[%s194 + $0x28] sm:$0xff]
        %v275 = vld [vmem:[%s194 + $0x30] sm:$0xff]
        %v276 = vld [vmem:[%s194 + $0x38] sm:$0xff]
        %v277 = vld [vmem:[%s194 + $0x40] sm:$0xff]
        %v278 = vld [vmem:[%s194 + $0x48] sm:$0xff]
        %v279 = vld [vmem:[%s194 + $0x50] sm:$0xff]
        %v280 = vld [vmem:[%s194 + $0x58] sm:$0xff]
        %v281 = vld [vmem:[%s194 + $0x60] sm:$0xff]
        %v282 = vld [vmem:[%s194 + $0x68] sm:$0xff]
        %v283 = vld [vmem:[%s194 + $0x70] sm:$0xff]
        %v284 = vld [vmem:[%s194 + $0x78] sm:$0xff]
        %v285 = vld [vmem:[#allocation3 + $0x200] ss:$0 sm:$0xff]
        %v286 = vld [vmem:[#allocation3 + $0x201] ss:$0 sm:$0xff]
        %v287 = vld [vmem:[#allocation3 + $0x202] ss:$0 sm:$0xff]
        %v288 = vld [vmem:[#allocation3 + $0x203] ss:$0 sm:$0xff]
        %v289 = vld [vmem:[#allocation3 + $0x204] ss:$0 sm:$0xff]
        %v290 = vld [vmem:[#allocation3 + $0x205] ss:$0 sm:$0xff]
        %v291 = vld [vmem:[#allocation3] sm:$0xff]
        %v292 = vld [vmem:[#allocation3 + $0x8] sm:$0xff]
        %v293 = vld [vmem:[#allocation3 + $0x10] sm:$0xff]
        %v294 = vld [vmem:[#allocation3 + $0x18] sm:$0xff]
        %v295 = vld [vmem:[#allocation3 + $0x20] sm:$0xff]
        %v296 = vld [vmem:[#allocation3 + $0x28] sm:$0xff]
        %v297 = vld [vmem:[#allocation3 + $0x30] sm:$0xff]
        %v298 = vld [vmem:[#allocation3 + $0x38] sm:$0xff]
        %v299 = vld [vmem:[#allocation3 + $0x40] sm:$0xff]
        %v300 = vld [vmem:[#allocation3 + $0x48] sm:$0xff]
        %v301 = vld [vmem:[#allocation3 + $0x50] sm:$0xff]
        %v302 = vld [vmem:[#allocation3 + $0x58] sm:$0xff]
        %v303 = vld [vmem:[#allocation3 + $0x60] sm:$0xff]
        %v304 = vld [vmem:[#allocation3 + $0x68] sm:$0xff]
        %v305 = vld [vmem:[#allocation3 + $0x70] sm:$0xff]
        %v306 = vld [vmem:[#allocation3 + $0x78] sm:$0xff]
        %v307 = vld [vmem:[#allocation3 + $0x80] sm:$0xff]
        %v308 = vld [vmem:[#allocation3 + $0x88] sm:$0xff]
        %v309 = vld [vmem:[#allocation3 + $0x90] sm:$0xff]
        %v310 = vld [vmem:[#allocation3 + $0x98] sm:$0xff]
        %v311 = vld [vmem:[#allocation3 + $0xa0] sm:$0xff]
        %v312 = vld [vmem:[#allocation3 + $0xa8] sm:$0xff]
        %v313 = vld [vmem:[#allocation3 + $0xb0] sm:$0xff]
        %v314 = vld [vmem:[#allocation3 + $0xb8] sm:$0xff]
        %v315 = vld [vmem:[#allocation3 + $0xc0] sm:$0xff]
        %v316 = vld [vmem:[#allocation3 + $0xc8] sm:$0xff]
        %v317 = vld [vmem:[#allocation3 + $0xd0] sm:$0xff]
        %v318 = vld [vmem:[#allocation3 + $0xd8] sm:$0xff]
        %v319 = vld [vmem:[#allocation3 + $0xe0] sm:$0xff]
        %v320 = vld [vmem:[#allocation3 + $0xe8] sm:$0xff]
        %v321 = vld [vmem:[#allocation3 + $0xf0] sm:$0xff]
        %v322 = vld [vmem:[#allocation3 + $0xf8] sm:$0xff]
        %323 = vmatprep.subr.mxu0 %v322
        %324 = vmatpush1.msra.mxu0 %v321
        %325 = vmatprep.subr.mxu0 %v320
        %326 = vmatpush1.msra.mxu0 %v319
        %327 = vmatprep.subr.mxu0 %v318
        %328 = vmatpush1.msra.mxu0 %v317
        %329 = vmatprep.subr.mxu0 %v316
        %330 = vmatpush1.msra.mxu0 %v315
        %331 = vmatprep.subr.mxu0 %v314
        %332 = vmatpush1.msra.mxu0 %v313
        %333 = vmatprep.subr.mxu0 %v312
        %334 = vmatpush1.msra.mxu0 %v311
        %335 = vmatprep.subr.mxu0 %v310
        %336 = vmatpush1.msra.mxu0 %v309
        %337 = vmatprep.subr.mxu0 %v308
        %338 = vmatpush1.msra.mxu0 %v307
        %339 = vmatprep.subr.mxu0 %v306
        %340 = vmatpush1.msra.mxu0 %v305
        %341 = vmatprep.subr.mxu0 %v304
        %342 = vmatpush1.msra.mxu0 %v303
        %343 = vmatprep.subr.mxu0 %v302
        %344 = vmatpush1.msra.mxu0 %v301
        %345 = vmatprep.subr.mxu0 %v300
        %346 = vmatpush1.msra.mxu0 %v299
        %347 = vmatprep.subr.mxu0 %v298
        %348 = vmatpush1.msra.mxu0 %v297
        %349 = vmatprep.subr.mxu0 %v296
        %350 = vmatpush1.msra.mxu0 %v295
        %351 = vmatprep.subr.mxu0 %v294
        %352 = vmatpush1.msra.mxu0 %v293
        %353 = vmatprep.subr.mxu0 %v292
        %354 = vmatpush1.msra.mxu0 %v291
        %355 = vmatprep.subr.mxu0 0.0
        %356 = vmatpush2.msra.mxu0 0.0
        %357 = vmatprep.subr.mxu0 0.0
        %358 = vmatpush2.msra.mxu0 0.0
        %359 = vmatprep.subr.mxu0 0.0
        %360 = vmatpush2.msra.mxu0 0.0
        %361 = vmatprep.subr.mxu0 0.0
        %362 = vmatpush2.msra.mxu0 0.0
        %363 = vmatprep.subr.mxu0 0.0
        %364 = vmatpush2.msra.mxu0 0.0
        %365 = vmatprep.subr.mxu0 0.0
        %366 = vmatpush2.msra.mxu0 0.0
        %367 = vmatprep.subr.mxu0 0.0
        %368 = vmatpush2.msra.mxu0 0.0
        %369 = vmatprep.subr.mxu0 0.0
        %370 = vmatpush2.msra.mxu0 0.0
        %371 = vmatprep.subr.mxu0 0.0
        %372 = vmatpush2.msra.mxu0 0.0
        %373 = vmatprep.subr.mxu0 0.0
        %374 = vmatpush2.msra.mxu0 0.0
        %375 = vmatprep.subr.mxu0 0.0
        %376 = vmatpush2.msra.mxu0 0.0
        %377 = vmatprep.subr.mxu0 0.0
        %378 = vmatpush2.msra.mxu0 0.0
        %379 = vmatprep.subr.mxu0 0.0
        %380 = vmatpush2.msra.mxu0 0.0
        %381 = vmatprep.subr.mxu0 0.0
        %382 = vmatpush2.msra.mxu0 0.0
        %383 = vmatprep.subr.mxu0 0.0
        %384 = vmatpush2.msra.mxu0 0.0
        %385 = vmatprep.subr.mxu0 0.0
        %386 = vmatpush2.msra.mxu0 0.0
        %387 = vmatprep.mubr.f32.mxu0 0.0
        %388 = vmatmul.mubr.f32.gmra.mxu0 %v253
        %v389 = vpop.f32.mrf.mxu0
        %v390 = vadd.f32 0.0, %v389
        %v391 = vpop.f32.mrf.mxu0
        %v392 = vadd.f32 0.0, %v391
        %393 = vmatprep.mubr.f32.mxu0 0.0
        %394 = vmatmul.mubr.f32.gmra.mxu0 %v254
        %v395 = vpop.f32.mrf.mxu0
        %v396 = vadd.f32 0.0, %v395
        %v397 = vpop.f32.mrf.mxu0
        %v398 = vadd.f32 0.0, %v397
        %399 = vmatprep.mubr.f32.mxu0 0.0
        %400 = vmatmul.mubr.f32.gmra.mxu0 %v255
        %v401 = vpop.f32.mrf.mxu0
        %v402 = vadd.f32 0.0, %v401
        %v403 = vpop.f32.mrf.mxu0
        %v404 = vadd.f32 0.0, %v403
        %405 = vmatprep.mubr.f32.mxu0 0.0
        %406 = vmatmul.mubr.f32.gmra.mxu0 %v256
        %v407 = vpop.f32.mrf.mxu0
        %v408 = vadd.f32 0.0, %v407
        %v409 = vpop.f32.mrf.mxu0
        %v410 = vadd.f32 0.0, %v409
        %411 = vmatprep.mubr.f32.mxu0 0.0
        %412 = vmatmul.mubr.f32.gmra.mxu0 %v257
        %v413 = vpop.f32.mrf.mxu0
        %v414 = vadd.f32 0.0, %v413
        %v415 = vpop.f32.mrf.mxu0
        %v416 = vadd.f32 0.0, %v415
        %417 = vmatprep.mubr.f32.mxu0 0.0
        %418 = vmatmul.mubr.f32.gmra.mxu0 %v258
        %v419 = vpop.f32.mrf.mxu0
        %v420 = vadd.f32 0.0, %v419
        %v421 = vpop.f32.mrf.mxu0
        %v422 = vadd.f32 0.0, %v421
        %423 = vmatprep.mubr.f32.mxu0 0.0
        %424 = vmatmul.mubr.f32.gmra.mxu0 %v259
        %v425 = vpop.f32.mrf.mxu0
        %v426 = vadd.f32 0.0, %v425
        %v427 = vpop.f32.mrf.mxu0
        %v428 = vadd.f32 0.0, %v427
        %429 = vmatprep.mubr.f32.mxu0 0.0
        %430 = vmatmul.mubr.f32.gmra.mxu0 %v260
        %v431 = vpop.f32.mrf.mxu0
        %v432 = vadd.f32 0.0, %v431
        %v433 = vpop.f32.mrf.mxu0
        %v434 = vadd.f32 0.0, %v433
        %435 = vmatprep.mubr.f32.mxu0 0.0
        %436 = vmatmul.mubr.f32.gmra.mxu0 %v261
        %v437 = vpop.f32.mrf.mxu0
        %v438 = vadd.f32 0.0, %v437
        %v439 = vpop.f32.mrf.mxu0
        %v440 = vadd.f32 0.0, %v439
        %441 = vmatprep.mubr.f32.mxu0 0.0
        %442 = vmatmul.mubr.f32.gmra.mxu0 %v262
        %v443 = vpop.f32.mrf.mxu0
        %v444 = vadd.f32 0.0, %v443
        %v445 = vpop.f32.mrf.mxu0
        %v446 = vadd.f32 0.0, %v445
        %447 = vmatprep.mubr.f32.mxu0 0.0
        %448 = vmatmul.mubr.f32.gmra.mxu0 %v263
        %v449 = vpop.f32.mrf.mxu0
        %v450 = vadd.f32 0.0, %v449
        %v451 = vpop.f32.mrf.mxu0
        %v452 = vadd.f32 0.0, %v451
        %453 = vmatprep.mubr.f32.mxu0 0.0
        %454 = vmatmul.mubr.f32.gmra.mxu0 %v264
        %v455 = vpop.f32.mrf.mxu0
        %v456 = vadd.f32 0.0, %v455
        %v457 = vpop.f32.mrf.mxu0
        %v458 = vadd.f32 0.0, %v457
        %459 = vmatprep.mubr.f32.mxu0 0.0
        %460 = vmatmul.mubr.f32.gmra.mxu0 %v265
        %v461 = vpop.f32.mrf.mxu0
        %v462 = vadd.f32 0.0, %v461
        %v463 = vpop.f32.mrf.mxu0
        %v464 = vadd.f32 0.0, %v463
        %465 = vmatprep.mubr.f32.mxu0 0.0
        %466 = vmatmul.mubr.f32.gmra.mxu0 %v266
        %v467 = vpop.f32.mrf.mxu0
        %v468 = vadd.f32 0.0, %v467
        %v469 = vpop.f32.mrf.mxu0
        %v470 = vadd.f32 0.0, %v469
        %471 = vmatprep.mubr.f32.mxu0 0.0
        %472 = vmatmul.mubr.f32.gmra.mxu0 %v267
        %v473 = vpop.f32.mrf.mxu0
        %v474 = vadd.f32 0.0, %v473
        %v475 = vpop.f32.mrf.mxu0
        %v476 = vadd.f32 0.0, %v475
        %477 = vmatprep.mubr.f32.mxu0 0.0
        %478 = vmatmul.mubr.f32.gmra.mxu0 %v268
        %v479 = vpop.f32.mrf.mxu0
        %v480 = vadd.f32 0.0, %v479
        %v481 = vpop.f32.mrf.mxu0
        %v482 = vadd.f32 0.0, %v481
        %483 = vdwg.mxu0
        %484 = vmatprep.subr.mxu0 0.0
        %485 = vmatpush1.msra.mxu0 %v482
        %486 = vmatprep.subr.mxu0 0.0
        %487 = vmatpush1.msra.mxu0 %v476
        %488 = vmatprep.subr.mxu0 0.0
        %489 = vmatpush1.msra.mxu0 %v470
        %490 = vmatprep.subr.mxu0 0.0
        %491 = vmatpush1.msra.mxu0 %v464
        %492 = vmatprep.subr.mxu0 0.0
        %493 = vmatpush1.msra.mxu0 %v458
        %494 = vmatprep.subr.mxu0 0.0
        %495 = vmatpush1.msra.mxu0 %v452
        %496 = vmatprep.subr.mxu0 0.0
        %497 = vmatpush1.msra.mxu0 %v446
        %498 = vmatprep.subr.mxu0 0.0
        %499 = vmatpush1.msra.mxu0 %v440
        %500 = vmatprep.subr.mxu0 0.0
        %501 = vmatpush1.msra.mxu0 %v434
        %502 = vmatprep.subr.mxu0 0.0
        %503 = vmatpush1.msra.mxu0 %v428
        %504 = vmatprep.subr.mxu0 0.0
        %505 = vmatpush1.msra.mxu0 %v422
        %506 = vmatprep.subr.mxu0 0.0
        %507 = vmatpush1.msra.mxu0 %v416
        %508 = vmatprep.subr.mxu0 0.0
        %509 = vmatpush1.msra.mxu0 %v410
        %510 = vmatprep.subr.mxu0 0.0
        %511 = vmatpush1.msra.mxu0 %v404
        %512 = vmatprep.subr.mxu0 0.0
        %513 = vmatpush1.msra.mxu0 %v398
        %514 = vmatprep.subr.mxu0 0.0
        %515 = vmatpush1.msra.mxu0 %v392
        %516 = vmatprep.subr.mxu0 0.0
        %517 = vmatpush2.msra.mxu0 0.0
        %518 = vmatprep.subr.mxu0 0.0
        %519 = vmatpush2.msra.mxu0 0.0
        %520 = vmatprep.subr.mxu0 0.0
        %521 = vmatpush2.msra.mxu0 0.0
        %522 = vmatprep.subr.mxu0 0.0
        %523 = vmatpush2.msra.mxu0 0.0
        %524 = vmatprep.subr.mxu0 0.0
        %525 = vmatpush2.msra.mxu0 0.0
        %526 = vmatprep.subr.mxu0 0.0
        %527 = vmatpush2.msra.mxu0 0.0
        %528 = vmatprep.subr.mxu0 0.0
        %529 = vmatpush2.msra.mxu0 0.0
        %530 = vmatprep.subr.mxu0 0.0
        %531 = vmatpush2.msra.mxu0 0.0
        %532 = vmatprep.subr.mxu0 0.0
        %533 = vmatpush2.msra.mxu0 0.0
        %534 = vmatprep.subr.mxu0 0.0
        %535 = vmatpush2.msra.mxu0 0.0
        %536 = vmatprep.subr.mxu0 0.0
        %537 = vmatpush2.msra.mxu0 0.0
        %538 = vmatprep.subr.mxu0 0.0
        %539 = vmatpush2.msra.mxu0 0.0
        %540 = vmatprep.subr.mxu0 0.0
        %541 = vmatpush2.msra.mxu0 0.0
        %542 = vmatprep.subr.mxu0 0.0
        %543 = vmatpush2.msra.mxu0 0.0
        %544 = vmatprep.subr.mxu0 0.0
        %545 = vmatpush2.msra.mxu0 0.0
        %546 = vmatprep.subr.mxu0 0.0
        %547 = vmatpush2.msra.mxu0 0.0
        %548 = vmatprep.mubr.f32.mxu0 0.0
        %549 = vmatmul.mubr.f32.gmra.mxu0 %v269
        %v550 = vpop.f32.mrf.mxu0
        %v551 = vadd.f32 0.0, %v550
        %v552 = vpop.f32.mrf.mxu0
        %553 = vmatprep.mubr.f32.mxu0 0.0
        %554 = vmatmul.mubr.f32.gmra.mxu0 %v270
        %v555 = vpop.f32.mrf.mxu0
        %v556 = vadd.f32 0.0, %v555
        %v557 = vpop.f32.mrf.mxu0
        %558 = vmatprep.mubr.f32.mxu0 0.0
        %559 = vmatmul.mubr.f32.gmra.mxu0 %v271
        %v560 = vpop.f32.mrf.mxu0
        %v561 = vadd.f32 0.0, %v560
        %v562 = vpop.f32.mrf.mxu0
        %563 = vmatprep.mubr.f32.mxu0 0.0
        %564 = vmatmul.mubr.f32.gmra.mxu0 %v272
        %v565 = vpop.f32.mrf.mxu0
        %v566 = vadd.f32 0.0, %v565
        %v567 = vpop.f32.mrf.mxu0
        %568 = vmatprep.mubr.f32.mxu0 0.0
        %569 = vmatmul.mubr.f32.gmra.mxu0 %v273
        %v570 = vpop.f32.mrf.mxu0
        %v571 = vadd.f32 0.0, %v570
        %v572 = vpop.f32.mrf.mxu0
        %573 = vmatprep.mubr.f32.mxu0 0.0
        %574 = vmatmul.mubr.f32.gmra.mxu0 %v274
        %v575 = vpop.f32.mrf.mxu0
        %v576 = vadd.f32 0.0, %v575
        %v577 = vpop.f32.mrf.mxu0
        %578 = vmatprep.mubr.f32.mxu0 0.0
        %579 = vmatmul.mubr.f32.gmra.mxu0 %v275
        %v580 = vpop.f32.mrf.mxu0
        %v581 = vadd.f32 0.0, %v580
        %v582 = vpop.f32.mrf.mxu0
        %583 = vmatprep.mubr.f32.mxu0 0.0
        %584 = vmatmul.mubr.f32.gmra.mxu0 %v276
        %v585 = vpop.f32.mrf.mxu0
        %v586 = vadd.f32 0.0, %v585
        %v587 = vpop.f32.mrf.mxu0
        %588 = vmatprep.mubr.f32.mxu0 0.0
        %589 = vmatmul.mubr.f32.gmra.mxu0 %v277
        %v590 = vpop.f32.mrf.mxu0
        %v591 = vadd.f32 0.0, %v590
        %v592 = vpop.f32.mrf.mxu0
        %593 = vmatprep.mubr.f32.mxu0 0.0
        %594 = vmatmul.mubr.f32.gmra.mxu0 %v278
        %v595 = vpop.f32.mrf.mxu0
        %v596 = vadd.f32 0.0, %v595
        %v597 = vpop.f32.mrf.mxu0
        %598 = vmatprep.mubr.f32.mxu0 0.0
        %599 = vmatmul.mubr.f32.gmra.mxu0 %v279
        %v600 = vpop.f32.mrf.mxu0
        %v601 = vadd.f32 0.0, %v600
        %v602 = vpop.f32.mrf.mxu0
        %603 = vmatprep.mubr.f32.mxu0 0.0
        %604 = vmatmul.mubr.f32.gmra.mxu0 %v280
        %v605 = vpop.f32.mrf.mxu0
        %v606 = vadd.f32 0.0, %v605
        %v607 = vpop.f32.mrf.mxu0
        %608 = vmatprep.mubr.f32.mxu0 0.0
        %609 = vmatmul.mubr.f32.gmra.mxu0 %v281
        %v610 = vpop.f32.mrf.mxu0
        %v611 = vadd.f32 0.0, %v610
        %v612 = vpop.f32.mrf.mxu0
        %613 = vmatprep.mubr.f32.mxu0 0.0
        %614 = vmatmul.mubr.f32.gmra.mxu0 %v282
        %v615 = vpop.f32.mrf.mxu0
        %v616 = vadd.f32 0.0, %v615
        %v617 = vpop.f32.mrf.mxu0
        %618 = vmatprep.mubr.f32.mxu0 0.0
        %619 = vmatmul.mubr.f32.gmra.mxu0 %v283
        %v620 = vpop.f32.mrf.mxu0
        %v621 = vadd.f32 0.0, %v620
        %v622 = vpop.f32.mrf.mxu0
        %623 = vmatprep.mubr.f32.mxu0 0.0
        %624 = vmatmul.mubr.f32.gmra.mxu0 %v284
        %v625 = vpop.f32.mrf.mxu0
        %v626 = vadd.f32 0.0, %v625
        %v627 = vpop.f32.mrf.mxu0
        %628 = vdwg.mxu0
        %v629 = vadd.f32 %v390, %v551
        %v630 = vadd.f32 %v396, %v556
        %v631 = vadd.f32 %v402, %v561
        %v632 = vadd.f32 %v408, %v566
        %v633 = vadd.f32 %v414, %v571
        %v634 = vadd.f32 %v420, %v576
        %v635 = vadd.f32 %v426, %v581
        %v636 = vadd.f32 %v432, %v586
        %v637 = vadd.f32 %v438, %v591
        %v638 = vadd.f32 %v444, %v596
        %v639 = vadd.f32 %v450, %v601
        %v640 = vadd.f32 %v456, %v606
        %v641 = vadd.f32 %v462, %v611
        %v642 = vadd.f32 %v468, %v616
        %v643 = vadd.f32 %v474, %v621
        %v644 = vadd.f32 %v480, %v626
        %v645 = vadd.f32 %v629, %v285
        %v646 = vadd.f32 %v630, %v285
        %v647 = vadd.f32 %v631, %v285
        %v648 = vadd.f32 %v632, %v285
        %v649 = vadd.f32 %v633, %v285
        %v650 = vadd.f32 %v634, %v285
        %v651 = vadd.f32 %v635, %v285
        %v652 = vadd.f32 %v636, %v285
        %v653 = vadd.f32 %v637, %v285
        %v654 = vadd.f32 %v638, %v285
        %v655 = vadd.f32 %v639, %v285
        %v656 = vadd.f32 %v640, %v285
        %v657 = vadd.f32 %v641, %v285
        %v658 = vadd.f32 %v642, %v285
        %v659 = vadd.f32 %v643, %v285
        %v660 = vadd.f32 %v644, %v285
        %v661 = vmax.f32 %v645, 0.0
        %v662 = vmax.f32 %v646, 0.0
        %v663 = vmax.f32 %v647, 0.0
        %v664 = vmax.f32 %v648, 0.0
        %v665 = vmax.f32 %v649, 0.0
        %v666 = vmax.f32 %v650, 0.0
        %v667 = vmax.f32 %v651, 0.0
        %v668 = vmax.f32 %v652, 0.0
        %v669 = vmax.f32 %v653, 0.0
        %v670 = vmax.f32 %v654, 0.0
        %v671 = vmax.f32 %v655, 0.0
        %v672 = vmax.f32 %v656, 0.0
        %v673 = vmax.f32 %v657, 0.0
        %v674 = vmax.f32 %v658, 0.0
        %v675 = vmax.f32 %v659, 0.0
        %v676 = vmax.f32 %v660, 0.0
        %v677 = vld [vmem:[#allocation3 + $0x100] sm:$0xff]
        %v678 = vld [vmem:[#allocation3 + $0x108] sm:$0xff]
        %v679 = vld [vmem:[#allocation3 + $0x110] sm:$0xff]
        %v680 = vld [vmem:[#allocation3 + $0x118] sm:$0xff]
        %v681 = vld [vmem:[#allocation3 + $0x120] sm:$0xff]
        %v682 = vld [vmem:[#allocation3 + $0x128] sm:$0xff]
        %v683 = vld [vmem:[#allocation3 + $0x130] sm:$0xff]
        %v684 = vld [vmem:[#allocation3 + $0x138] sm:$0xff]
        %v685 = vld [vmem:[#allocation3 + $0x140] sm:$0xff]
        %v686 = vld [vmem:[#allocation3 + $0x148] sm:$0xff]
        %v687 = vld [vmem:[#allocation3 + $0x150] sm:$0xff]
        %v688 = vld [vmem:[#allocation3 + $0x158] sm:$0xff]
        %v689 = vld [vmem:[#allocation3 + $0x160] sm:$0xff]
        %v690 = vld [vmem:[#allocation3 + $0x168] sm:$0xff]
        %v691 = vld [vmem:[#allocation3 + $0x170] sm:$0xff]
        %v692 = vld [vmem:[#allocation3 + $0x178] sm:$0xff]
        %v693 = vld [vmem:[#allocation3 + $0x180] sm:$0xff]
        %v694 = vld [vmem:[#allocation3 + $0x188] sm:$0xff]
        %v695 = vld [vmem:[#allocation3 + $0x190] sm:$0xff]
        %v696 = vld [vmem:[#allocation3 + $0x198] sm:$0xff]
        %v697 = vld [vmem:[#allocation3 + $0x1a0] sm:$0xff]
        %v698 = vld [vmem:[#allocation3 + $0x1a8] sm:$0xff]
        %v699 = vld [vmem:[#allocation3 + $0x1b0] sm:$0xff]
        %v700 = vld [vmem:[#allocation3 + $0x1b8] sm:$0xff]
        %v701 = vld [vmem:[#allocation3 + $0x1c0] sm:$0xff]
        %v702 = vld [vmem:[#allocation3 + $0x1c8] sm:$0xff]
        %v703 = vld [vmem:[#allocation3 + $0x1d0] sm:$0xff]
        %v704 = vld [vmem:[#allocation3 + $0x1d8] sm:$0xff]
        %v705 = vld [vmem:[#allocation3 + $0x1e0] sm:$0xff]
        %v706 = vld [vmem:[#allocation3 + $0x1e8] sm:$0xff]
        %v707 = vld [vmem:[#allocation3 + $0x1f0] sm:$0xff]
        %v708 = vld [vmem:[#allocation3 + $0x1f8] sm:$0xff]
        %709 = vmatprep.subr.mxu0 %v708
        %710 = vmatpush1.msra.mxu0 %v707
        %711 = vmatprep.subr.mxu0 %v706
        %712 = vmatpush1.msra.mxu0 %v705
        %713 = vmatprep.subr.mxu0 %v704
        %714 = vmatpush1.msra.mxu0 %v703
        %715 = vmatprep.subr.mxu0 %v702
        %716 = vmatpush1.msra.mxu0 %v701
        %717 = vmatprep.subr.mxu0 %v700
        %718 = vmatpush1.msra.mxu0 %v699
        %719 = vmatprep.subr.mxu0 %v698
        %720 = vmatpush1.msra.mxu0 %v697
        %721 = vmatprep.subr.mxu0 %v696
        %722 = vmatpush1.msra.mxu0 %v695
        %723 = vmatprep.subr.mxu0 %v694
        %724 = vmatpush1.msra.mxu0 %v693
        %725 = vmatprep.subr.mxu0 %v692
        %726 = vmatpush1.msra.mxu0 %v691
        %727 = vmatprep.subr.mxu0 %v690
        %728 = vmatpush1.msra.mxu0 %v689
        %729 = vmatprep.subr.mxu0 %v688
        %730 = vmatpush1.msra.mxu0 %v687
        %731 = vmatprep.subr.mxu0 %v686
        %732 = vmatpush1.msra.mxu0 %v685
        %733 = vmatprep.subr.mxu0 %v684
        %734 = vmatpush1.msra.mxu0 %v683
        %735 = vmatprep.subr.mxu0 %v682
        %736 = vmatpush1.msra.mxu0 %v681
        %737 = vmatprep.subr.mxu0 %v680
        %738 = vmatpush1.msra.mxu0 %v679
        %739 = vmatprep.subr.mxu0 %v678
        %740 = vmatpush1.msra.mxu0 %v677
        %741 = vmatprep.subr.mxu0 0.0
        %742 = vmatpush2.msra.mxu0 0.0
        %743 = vmatprep.subr.mxu0 0.0
        %744 = vmatpush2.msra.mxu0 0.0
        %745 = vmatprep.subr.mxu0 0.0
        %746 = vmatpush2.msra.mxu0 0.0
        %747 = vmatprep.subr.mxu0 0.0
        %748 = vmatpush2.msra.mxu0 0.0
        %749 = vmatprep.subr.mxu0 0.0
        %750 = vmatpush2.msra.mxu0 0.0
        %751 = vmatprep.subr.mxu0 0.0
        %752 = vmatpush2.msra.mxu0 0.0
        %753 = vmatprep.subr.mxu0 0.0
        %754 = vmatpush2.msra.mxu0 0.0
        %755 = vmatprep.subr.mxu0 0.0
        %756 = vmatpush2.msra.mxu0 0.0
        %757 = vmatprep.subr.mxu0 0.0
        %758 = vmatpush2.msra.mxu0 0.0
        %759 = vmatprep.subr.mxu0 0.0
        %760 = vmatpush2.msra.mxu0 0.0
        %761 = vmatprep.subr.mxu0 0.0
        %762 = vmatpush2.msra.mxu0 0.0
        %763 = vmatprep.subr.mxu0 0.0
        %764 = vmatpush2.msra.mxu0 0.0
        %765 = vmatprep.subr.mxu0 0.0
        %766 = vmatpush2.msra.mxu0 0.0
        %767 = vmatprep.subr.mxu0 0.0
        %768 = vmatpush2.msra.mxu0 0.0
        %769 = vmatprep.subr.mxu0 0.0
        %770 = vmatpush2.msra.mxu0 0.0
        %771 = vmatprep.subr.mxu0 0.0
        %772 = vmatpush2.msra.mxu0 0.0
        %773 = vmatprep.mubr.f32.mxu0 0.0
        %774 = vmatmul.mubr.f32.gmra.mxu0 %v661
        %v775 = vpop.f32.mrf.mxu0
        %v776 = vadd.f32 0.0, %v775
        %v777 = vpop.f32.mrf.mxu0
        %v778 = vadd.f32 0.0, %v777
        %779 = vmatprep.mubr.f32.mxu0 0.0
        %780 = vmatmul.mubr.f32.gmra.mxu0 %v662
        %v781 = vpop.f32.mrf.mxu0
        %v782 = vadd.f32 0.0, %v781
        %v783 = vpop.f32.mrf.mxu0
        %v784 = vadd.f32 0.0, %v783
        %785 = vmatprep.mubr.f32.mxu0 0.0
        %786 = vmatmul.mubr.f32.gmra.mxu0 %v663
        %v787 = vpop.f32.mrf.mxu0
        %v788 = vadd.f32 0.0, %v787
        %v789 = vpop.f32.mrf.mxu0
        %v790 = vadd.f32 0.0, %v789
        %791 = vmatprep.mubr.f32.mxu0 0.0
        %792 = vmatmul.mubr.f32.gmra.mxu0 %v664
        %v793 = vpop.f32.mrf.mxu0
        %v794 = vadd.f32 0.0, %v793
        %v795 = vpop.f32.mrf.mxu0
        %v796 = vadd.f32 0.0, %v795
        %797 = vmatprep.mubr.f32.mxu0 0.0
        %798 = vmatmul.mubr.f32.gmra.mxu0 %v665
        %v799 = vpop.f32.mrf.mxu0
        %v800 = vadd.f32 0.0, %v799
        %v801 = vpop.f32.mrf.mxu0
        %v802 = vadd.f32 0.0, %v801
        %803 = vmatprep.mubr.f32.mxu0 0.0
        %804 = vmatmul.mubr.f32.gmra.mxu0 %v666
        %v805 = vpop.f32.mrf.mxu0
        %v806 = vadd.f32 0.0, %v805
        %v807 = vpop.f32.mrf.mxu0
        %v808 = vadd.f32 0.0, %v807
        %809 = vmatprep.mubr.f32.mxu0 0.0
        %810 = vmatmul.mubr.f32.gmra.mxu0 %v667
        %v811 = vpop.f32.mrf.mxu0
        %v812 = vadd.f32 0.0, %v811
        %v813 = vpop.f32.mrf.mxu0
        %v814 = vadd.f32 0.0, %v813
        %815 = vmatprep.mubr.f32.mxu0 0.0
        %816 = vmatmul.mubr.f32.gmra.mxu0 %v668
        %v817 = vpop.f32.mrf.mxu0
        %v818 = vadd.f32 0.0, %v817
        %v819 = vpop.f32.mrf.mxu0
        %v820 = vadd.f32 0.0, %v819
        %821 = vmatprep.mubr.f32.mxu0 0.0
        %822 = vmatmul.mubr.f32.gmra.mxu0 %v669
        %v823 = vpop.f32.mrf.mxu0
        %v824 = vadd.f32 0.0, %v823
        %v825 = vpop.f32.mrf.mxu0
        %v826 = vadd.f32 0.0, %v825
        %827 = vmatprep.mubr.f32.mxu0 0.0
        %828 = vmatmul.mubr.f32.gmra.mxu0 %v670
        %v829 = vpop.f32.mrf.mxu0
        %v830 = vadd.f32 0.0, %v829
        %v831 = vpop.f32.mrf.mxu0
        %v832 = vadd.f32 0.0, %v831
        %833 = vmatprep.mubr.f32.mxu0 0.0
        %834 = vmatmul.mubr.f32.gmra.mxu0 %v671
        %v835 = vpop.f32.mrf.mxu0
        %v836 = vadd.f32 0.0, %v835
        %v837 = vpop.f32.mrf.mxu0
        %v838 = vadd.f32 0.0, %v837
        %839 = vmatprep.mubr.f32.mxu0 0.0
        %840 = vmatmul.mubr.f32.gmra.mxu0 %v672
        %v841 = vpop.f32.mrf.mxu0
        %v842 = vadd.f32 0.0, %v841
        %v843 = vpop.f32.mrf.mxu0
        %v844 = vadd.f32 0.0, %v843
        %845 = vmatprep.mubr.f32.mxu0 0.0
        %846 = vmatmul.mubr.f32.gmra.mxu0 %v673
        %v847 = vpop.f32.mrf.mxu0
        %v848 = vadd.f32 0.0, %v847
        %v849 = vpop.f32.mrf.mxu0
        %v850 = vadd.f32 0.0, %v849
        %851 = vmatprep.mubr.f32.mxu0 0.0
        %852 = vmatmul.mubr.f32.gmra.mxu0 %v674
        %v853 = vpop.f32.mrf.mxu0
        %v854 = vadd.f32 0.0, %v853
        %v855 = vpop.f32.mrf.mxu0
        %v856 = vadd.f32 0.0, %v855
        %857 = vmatprep.mubr.f32.mxu0 0.0
        %858 = vmatmul.mubr.f32.gmra.mxu0 %v675
        %v859 = vpop.f32.mrf.mxu0
        %v860 = vadd.f32 0.0, %v859
        %v861 = vpop.f32.mrf.mxu0
        %v862 = vadd.f32 0.0, %v861
        %863 = vmatprep.mubr.f32.mxu0 0.0
        %864 = vmatmul.mubr.f32.gmra.mxu0 %v676
        %v865 = vpop.f32.mrf.mxu0
        %v866 = vadd.f32 0.0, %v865
        %v867 = vpop.f32.mrf.mxu0
        %v868 = vadd.f32 0.0, %v867
        %869 = vdwg.mxu0
        %870 = vmatprep.subr.mxu0 0.0
        %871 = vmatpush1.msra.mxu0 %v868
        %872 = vmatprep.subr.mxu0 0.0
        %873 = vmatpush1.msra.mxu0 %v862
        %874 = vmatprep.subr.mxu0 0.0
        %875 = vmatpush1.msra.mxu0 %v856
        %876 = vmatprep.subr.mxu0 0.0
        %877 = vmatpush1.msra.mxu0 %v850
        %878 = vmatprep.subr.mxu0 0.0
        %879 = vmatpush1.msra.mxu0 %v844
        %880 = vmatprep.subr.mxu0 0.0
        %881 = vmatpush1.msra.mxu0 %v838
        %882 = vmatprep.subr.mxu0 0.0
        %883 = vmatpush1.msra.mxu0 %v832
        %884 = vmatprep.subr.mxu0 0.0
        %885 = vmatpush1.msra.mxu0 %v826
        %886 = vmatprep.subr.mxu0 0.0
        %887 = vmatpush1.msra.mxu0 %v820
        %888 = vmatprep.subr.mxu0 0.0
        %889 = vmatpush1.msra.mxu0 %v814
        %890 = vmatprep.subr.mxu0 0.0
        %891 = vmatpush1.msra.mxu0 %v808
        %892 = vmatprep.subr.mxu0 0.0
        %893 = vmatpush1.msra.mxu0 %v802
        %894 = vmatprep.subr.mxu0 0.0
        %895 = vmatpush1.msra.mxu0 %v796
        %896 = vmatprep.subr.mxu0 0.0
        %897 = vmatpush1.msra.mxu0 %v790
        %898 = vmatprep.subr.mxu0 0.0
        %899 = vmatpush1.msra.mxu0 %v784
        %900 = vmatprep.subr.mxu0 0.0
        %901 = vmatpush1.msra.mxu0 %v778
        %902 = vmatprep.subr.mxu0 0.0
        %903 = vmatpush2.msra.mxu0 0.0
        %904 = vmatprep.subr.mxu0 0.0
        %905 = vmatpush2.msra.mxu0 0.0
        %906 = vmatprep.subr.mxu0 0.0
        %907 = vmatpush2.msra.mxu0 0.0
        %908 = vmatprep.subr.mxu0 0.0
        %909 = vmatpush2.msra.mxu0 0.0
        %910 = vmatprep.subr.mxu0 0.0
        %911 = vmatpush2.msra.mxu0 0.0
        %912 = vmatprep.subr.mxu0 0.0
        %913 = vmatpush2.msra.mxu0 0.0
        %914 = vmatprep.subr.mxu0 0.0
        %915 = vmatpush2.msra.mxu0 0.0
        %916 = vmatprep.subr.mxu0 0.0
        %917 = vmatpush2.msra.mxu0 0.0
        %918 = vmatprep.subr.mxu0 0.0
        %919 = vmatpush2.msra.mxu0 0.0
        %920 = vmatprep.subr.mxu0 0.0
        %921 = vmatpush2.msra.mxu0 0.0
        %922 = vmatprep.subr.mxu0 0.0
        %923 = vmatpush2.msra.mxu0 0.0
        %924 = vmatprep.subr.mxu0 0.0
        %925 = vmatpush2.msra.mxu0 0.0
        %926 = vmatprep.subr.mxu0 0.0
        %927 = vmatpush2.msra.mxu0 0.0
        %928 = vmatprep.subr.mxu0 0.0
        %929 = vmatpush2.msra.mxu0 0.0
        %930 = vmatprep.subr.mxu0 0.0
        %931 = vmatpush2.msra.mxu0 0.0
        %932 = vmatprep.subr.mxu0 0.0
        %933 = vmatpush2.msra.mxu0 0.0
        %934 = vmatprep.mubr.f32.mxu0 0.0
        %935 = vmatmul.mubr.f32.gmra.mxu0 %v269
        %v936 = vpop.f32.mrf.mxu0
        %v937 = vadd.f32 0.0, %v936
        %v938 = vpop.f32.mrf.mxu0
        %939 = vmatprep.mubr.f32.mxu0 0.0
        %940 = vmatmul.mubr.f32.gmra.mxu0 %v270
        %v941 = vpop.f32.mrf.mxu0
        %v942 = vadd.f32 0.0, %v941
        %v943 = vpop.f32.mrf.mxu0
        %944 = vmatprep.mubr.f32.mxu0 0.0
        %945 = vmatmul.mubr.f32.gmra.mxu0 %v271
        %v946 = vpop.f32.mrf.mxu0
        %v947 = vadd.f32 0.0, %v946
        %v948 = vpop.f32.mrf.mxu0
        %949 = vmatprep.mubr.f32.mxu0 0.0
        %950 = vmatmul.mubr.f32.gmra.mxu0 %v272
        %v951 = vpop.f32.mrf.mxu0
        %v952 = vadd.f32 0.0, %v951
        %v953 = vpop.f32.mrf.mxu0
        %954 = vmatprep.mubr.f32.mxu0 0.0
        %955 = vmatmul.mubr.f32.gmra.mxu0 %v273
        %v956 = vpop.f32.mrf.mxu0
        %v957 = vadd.f32 0.0, %v956
        %v958 = vpop.f32.mrf.mxu0
        %959 = vmatprep.mubr.f32.mxu0 0.0
        %960 = vmatmul.mubr.f32.gmra.mxu0 %v274
        %v961 = vpop.f32.mrf.mxu0
        %v962 = vadd.f32 0.0, %v961
        %v963 = vpop.f32.mrf.mxu0
        %964 = vmatprep.mubr.f32.mxu0 0.0
        %965 = vmatmul.mubr.f32.gmra.mxu0 %v275
        %v966 = vpop.f32.mrf.mxu0
        %v967 = vadd.f32 0.0, %v966
        %v968 = vpop.f32.mrf.mxu0
        %969 = vmatprep.mubr.f32.mxu0 0.0
        %970 = vmatmul.mubr.f32.gmra.mxu0 %v276
        %v971 = vpop.f32.mrf.mxu0
        %v972 = vadd.f32 0.0, %v971
        %v973 = vpop.f32.mrf.mxu0
        %974 = vmatprep.mubr.f32.mxu0 0.0
        %975 = vmatmul.mubr.f32.gmra.mxu0 %v277
        %v976 = vpop.f32.mrf.mxu0
        %v977 = vadd.f32 0.0, %v976
        %v978 = vpop.f32.mrf.mxu0
        %979 = vmatprep.mubr.f32.mxu0 0.0
        %980 = vmatmul.mubr.f32.gmra.mxu0 %v278
        %v981 = vpop.f32.mrf.mxu0
        %v982 = vadd.f32 0.0, %v981
        %v983 = vpop.f32.mrf.mxu0
        %984 = vmatprep.mubr.f32.mxu0 0.0
        %985 = vmatmul.mubr.f32.gmra.mxu0 %v279
        %v986 = vpop.f32.mrf.mxu0
        %v987 = vadd.f32 0.0, %v986
        %v988 = vpop.f32.mrf.mxu0
        %989 = vmatprep.mubr.f32.mxu0 0.0
        %990 = vmatmul.mubr.f32.gmra.mxu0 %v280
        %v991 = vpop.f32.mrf.mxu0
        %v992 = vadd.f32 0.0, %v991
        %v993 = vpop.f32.mrf.mxu0
        %994 = vmatprep.mubr.f32.mxu0 0.0
        %995 = vmatmul.mubr.f32.gmra.mxu0 %v281
        %v996 = vpop.f32.mrf.mxu0
        %v997 = vadd.f32 0.0, %v996
        %v998 = vpop.f32.mrf.mxu0
        %999 = vmatprep.mubr.f32.mxu0 0.0
        %1000 = vmatmul.mubr.f32.gmra.mxu0 %v282
        %v1001 = vpop.f32.mrf.mxu0
        %v1002 = vadd.f32 0.0, %v1001
        %v1003 = vpop.f32.mrf.mxu0
        %1004 = vmatprep.mubr.f32.mxu0 0.0
        %1005 = vmatmul.mubr.f32.gmra.mxu0 %v283
        %v1006 = vpop.f32.mrf.mxu0
        %v1007 = vadd.f32 0.0, %v1006
        %v1008 = vpop.f32.mrf.mxu0
        %1009 = vmatprep.mubr.f32.mxu0 0.0
        %1010 = vmatmul.mubr.f32.gmra.mxu0 %v284
        %v1011 = vpop.f32.mrf.mxu0
        %v1012 = vadd.f32 0.0, %v1011
        %v1013 = vpop.f32.mrf.mxu0
        %1014 = vdwg.mxu0
        %v1015 = vadd.f32 %v776, %v937
        %v1016 = vadd.f32 %v782, %v942
        %v1017 = vadd.f32 %v788, %v947
        %v1018 = vadd.f32 %v794, %v952
        %v1019 = vadd.f32 %v800, %v957
        %v1020 = vadd.f32 %v806, %v962
        %v1021 = vadd.f32 %v812, %v967
        %v1022 = vadd.f32 %v818, %v972
        %v1023 = vadd.f32 %v824, %v977
        %v1024 = vadd.f32 %v830, %v982
        %v1025 = vadd.f32 %v836, %v987
        %v1026 = vadd.f32 %v842, %v992
        %v1027 = vadd.f32 %v848, %v997
        %v1028 = vadd.f32 %v854, %v1002
        %v1029 = vadd.f32 %v860, %v1007
        %v1030 = vadd.f32 %v866, %v1012
        %v1031 = vadd.f32 %v1015, %v286
        %v1032 = vadd.f32 %v1016, %v286
        %v1033 = vadd.f32 %v1017, %v286
        %v1034 = vadd.f32 %v1018, %v286
        %v1035 = vadd.f32 %v1019, %v286
        %v1036 = vadd.f32 %v1020, %v286
        %v1037 = vadd.f32 %v1021, %v286
        %v1038 = vadd.f32 %v1022, %v286
        %v1039 = vadd.f32 %v1023, %v286
        %v1040 = vadd.f32 %v1024, %v286
        %v1041 = vadd.f32 %v1025, %v286
        %v1042 = vadd.f32 %v1026, %v286
        %v1043 = vadd.f32 %v1027, %v286
        %v1044 = vadd.f32 %v1028, %v286
        %v1045 = vadd.f32 %v1029, %v286
        %v1046 = vadd.f32 %v1030, %v286
        %v1047 = vmax.f32 %v1031, 0.0
        %v1048 = vmax.f32 %v1032, 0.0
        %v1049 = vmax.f32 %v1033, 0.0
        %v1050 = vmax.f32 %v1034, 0.0
        %v1051 = vmax.f32 %v1035, 0.0
        %v1052 = vmax.f32 %v1036, 0.0
        %v1053 = vmax.f32 %v1037, 0.0
        %v1054 = vmax.f32 %v1038, 0.0
        %v1055 = vmax.f32 %v1039, 0.0
        %v1056 = vmax.f32 %v1040, 0.0
        %v1057 = vmax.f32 %v1041, 0.0
        %v1058 = vmax.f32 %v1042, 0.0
        %v1059 = vmax.f32 %v1043, 0.0
        %v1060 = vmax.f32 %v1044, 0.0
        %v1061 = vmax.f32 %v1045, 0.0
        %v1062 = vmax.f32 %v1046, 0.0
        %v1063 = vmul.f32 %v1047, %v287
        %v1064 = vmul.f32 %v1048, %v287
        %v1065 = vmul.f32 %v1049, %v287
        %v1066 = vmul.f32 %v1050, %v287
        %v1067 = vmul.f32 %v1051, %v287
        %v1068 = vmul.f32 %v1052, %v287
        %v1069 = vmul.f32 %v1053, %v287
        %v1070 = vmul.f32 %v1054, %v287
        %v1071 = vmul.f32 %v1055, %v287
        %v1072 = vmul.f32 %v1056, %v287
        %v1073 = vmul.f32 %v1057, %v287
        %v1074 = vmul.f32 %v1058, %v287
        %v1075 = vmul.f32 %v1059, %v287
        %v1076 = vmul.f32 %v1060, %v287
        %v1077 = vmul.f32 %v1061, %v287
        %v1078 = vmul.f32 %v1062, %v287
        %1079 = vadd.xlane.f32.xlu0 %v1063
        %v1080 = vpop.xlane.xlu0 %1079
        %1081 = vadd.xlane.f32.xlu0 %v1064
        %v1082 = vpop.xlane.xlu0 %1081
        %1083 = vadd.xlane.f32.xlu0 %v1065
        %v1084 = vpop.xlane.xlu0 %1083
        %1085 = vadd.xlane.f32.xlu0 %v1066
        %v1086 = vpop.xlane.xlu0 %1085
        %1087 = vadd.xlane.f32.xlu0 %v1067
        %v1088 = vpop.xlane.xlu0 %1087
        %1089 = vadd.xlane.f32.xlu0 %v1068
        %v1090 = vpop.xlane.xlu0 %1089
        %1091 = vadd.xlane.f32.xlu0 %v1069
        %v1092 = vpop.xlane.xlu0 %1091
        %1093 = vadd.xlane.f32.xlu0 %v1070
        %v1094 = vpop.xlane.xlu0 %1093
        %1095 = vadd.xlane.f32.xlu0 %v1071
        %v1096 = vpop.xlane.xlu0 %1095
        %1097 = vadd.xlane.f32.xlu0 %v1072
        %v1098 = vpop.xlane.xlu0 %1097
        %1099 = vadd.xlane.f32.xlu0 %v1073
        %v1100 = vpop.xlane.xlu0 %1099
        %1101 = vadd.xlane.f32.xlu0 %v1074
        %v1102 = vpop.xlane.xlu0 %1101
        %1103 = vadd.xlane.f32.xlu0 %v1075
        %v1104 = vpop.xlane.xlu0 %1103
        %1105 = vadd.xlane.f32.xlu0 %v1076
        %v1106 = vpop.xlane.xlu0 %1105
        %1107 = vadd.xlane.f32.xlu0 %v1077
        %v1108 = vpop.xlane.xlu0 %1107
        %1109 = vadd.xlane.f32.xlu0 %v1078
        %v1110 = vpop.xlane.xlu0 %1109
        %v1111 = vadd.f32 %v1080, %v290
        %v1112 = vadd.f32 %v1082, %v290
        %v1113 = vadd.f32 %v1084, %v290
        %v1114 = vadd.f32 %v1086, %v290
        %v1115 = vadd.f32 %v1088, %v290
        %v1116 = vadd.f32 %v1090, %v290
        %v1117 = vadd.f32 %v1092, %v290
        %v1118 = vadd.f32 %v1094, %v290
        %v1119 = vadd.f32 %v1096, %v290
        %v1120 = vadd.f32 %v1098, %v290
        %v1121 = vadd.f32 %v1100, %v290
        %v1122 = vadd.f32 %v1102, %v290
        %v1123 = vadd.f32 %v1104, %v290
        %v1124 = vadd.f32 %v1106, %v290
        %v1125 = vadd.f32 %v1108, %v290
        %v1126 = vadd.f32 %v1110, %v290
        %v1127 = vxor.u32 %v1111, 2147483648
        %v1128 = vxor.u32 %v1112, 2147483648
        %v1129 = vxor.u32 %v1113, 2147483648
        %v1130 = vxor.u32 %v1114, 2147483648
        %v1131 = vxor.u32 %v1115, 2147483648
        %v1132 = vxor.u32 %v1116, 2147483648
        %v1133 = vxor.u32 %v1117, 2147483648
        %v1134 = vxor.u32 %v1118, 2147483648
        %v1135 = vxor.u32 %v1119, 2147483648
        %v1136 = vxor.u32 %v1120, 2147483648
        %v1137 = vxor.u32 %v1121, 2147483648
        %v1138 = vxor.u32 %v1122, 2147483648
        %v1139 = vxor.u32 %v1123, 2147483648
        %v1140 = vxor.u32 %v1124, 2147483648
        %v1141 = vxor.u32 %v1125, 2147483648
        %v1142 = vxor.u32 %v1126, 2147483648
        %v1143 = vmul.f32 %v1127, 1.442695
        %v1144 = vpow.pop %v1143
        %v1145 = vmul.f32 %v1128, 1.442695
        %v1146 = vpow.pop %v1145
        %v1147 = vmul.f32 %v1129, 1.442695
        %v1148 = vpow.pop %v1147
        %v1149 = vmul.f32 %v1130, 1.442695
        %v1150 = vpow.pop %v1149
        %v1151 = vmul.f32 %v1131, 1.442695
        %v1152 = vpow.pop %v1151
        %v1153 = vmul.f32 %v1132, 1.442695
        %v1154 = vpow.pop %v1153
        %v1155 = vmul.f32 %v1133, 1.442695
        %v1156 = vpow.pop %v1155
        %v1157 = vmul.f32 %v1134, 1.442695
        %v1158 = vpow.pop %v1157
        %v1159 = vmul.f32 %v1135, 1.442695
        %v1160 = vpow.pop %v1159
        %v1161 = vmul.f32 %v1136, 1.442695
        %v1162 = vpow.pop %v1161
        %v1163 = vmul.f32 %v1137, 1.442695
        %v1164 = vpow.pop %v1163
        %v1165 = vmul.f32 %v1138, 1.442695
        %v1166 = vpow.pop %v1165
        %v1167 = vmul.f32 %v1139, 1.442695
        %v1168 = vpow.pop %v1167
        %v1169 = vmul.f32 %v1140, 1.442695
        %v1170 = vpow.pop %v1169
        %v1171 = vmul.f32 %v1141, 1.442695
        %v1172 = vpow.pop %v1171
        %v1173 = vmul.f32 %v1142, 1.442695
        %v1174 = vpow.pop %v1173
        %v1175 = vadd.f32 %v1144, 1.0
        %v1176 = vadd.f32 %v1146, 1.0
        %v1177 = vadd.f32 %v1148, 1.0
        %v1178 = vadd.f32 %v1150, 1.0
        %v1179 = vadd.f32 %v1152, 1.0
        %v1180 = vadd.f32 %v1154, 1.0
        %v1181 = vadd.f32 %v1156, 1.0
        %v1182 = vadd.f32 %v1158, 1.0
        %v1183 = vadd.f32 %v1160, 1.0
        %v1184 = vadd.f32 %v1162, 1.0
        %v1185 = vadd.f32 %v1164, 1.0
        %v1186 = vadd.f32 %v1166, 1.0
        %v1187 = vadd.f32 %v1168, 1.0
        %v1188 = vadd.f32 %v1170, 1.0
        %v1189 = vadd.f32 %v1172, 1.0
        %v1190 = vadd.f32 %v1174, 1.0
        %v1191 = vrcp.pop %v1175
        %v1192 = vmul.f32 1.0, %v1191
        %v1193 = vrcp.pop %v1176
        %v1194 = vmul.f32 1.0, %v1193
        %v1195 = vrcp.pop %v1177
        %v1196 = vmul.f32 1.0, %v1195
        %v1197 = vrcp.pop %v1178
        %v1198 = vmul.f32 1.0, %v1197
        %v1199 = vrcp.pop %v1179
        %v1200 = vmul.f32 1.0, %v1199
        %v1201 = vrcp.pop %v1180
        %v1202 = vmul.f32 1.0, %v1201
        %v1203 = vrcp.pop %v1181
        %v1204 = vmul.f32 1.0, %v1203
        %v1205 = vrcp.pop %v1182
        %v1206 = vmul.f32 1.0, %v1205
        %v1207 = vrcp.pop %v1183
        %v1208 = vmul.f32 1.0, %v1207
        %v1209 = vrcp.pop %v1184
        %v1210 = vmul.f32 1.0, %v1209
        %v1211 = vrcp.pop %v1185
        %v1212 = vmul.f32 1.0, %v1211
        %v1213 = vrcp.pop %v1186
        %v1214 = vmul.f32 1.0, %v1213
        %v1215 = vrcp.pop %v1187
        %v1216 = vmul.f32 1.0, %v1215
        %v1217 = vrcp.pop %v1188
        %v1218 = vmul.f32 1.0, %v1217
        %v1219 = vrcp.pop %v1189
        %v1220 = vmul.f32 1.0, %v1219
        %v1221 = vrcp.pop %v1190
        %v1222 = vmul.f32 1.0, %v1221
        %1224 = vset.pattern.permute.xlu0 0
        %1225 = vperm.xlu0 %1224, %v1192
        %v1226 = vpop.permute.xlu0 %1225
        %1229 = vset.pattern.permute.xlu0 0
        %1230 = vperm.xlu0 %1229, %v1194
        %v1231 = vpop.permute.xlu0 %1230
        %1234 = vset.pattern.permute.xlu0 0
        %1235 = vperm.xlu0 %1234, %v1196
        %v1236 = vpop.permute.xlu0 %1235
        %1239 = vset.pattern.permute.xlu0 0
        %1240 = vperm.xlu0 %1239, %v1198
        %v1241 = vpop.permute.xlu0 %1240
        %1244 = vset.pattern.permute.xlu0 0
        %1245 = vperm.xlu0 %1244, %v1200
        %v1246 = vpop.permute.xlu0 %1245
        %1249 = vset.pattern.permute.xlu0 0
        %1250 = vperm.xlu0 %1249, %v1202
        %v1251 = vpop.permute.xlu0 %1250
        %1254 = vset.pattern.permute.xlu0 0
        %1255 = vperm.xlu0 %1254, %v1204
        %v1256 = vpop.permute.xlu0 %1255
        %1259 = vset.pattern.permute.xlu0 0
        %1260 = vperm.xlu0 %1259, %v1206
        %v1261 = vpop.permute.xlu0 %1260
        %1264 = vset.pattern.permute.xlu0 0
        %1265 = vperm.xlu0 %1264, %v1208
        %v1266 = vpop.permute.xlu0 %1265
        %1269 = vset.pattern.permute.xlu0 0
        %1270 = vperm.xlu0 %1269, %v1210
        %v1271 = vpop.permute.xlu0 %1270
        %1274 = vset.pattern.permute.xlu0 0
        %1275 = vperm.xlu0 %1274, %v1212
        %v1276 = vpop.permute.xlu0 %1275
        %1279 = vset.pattern.permute.xlu0 0
        %1280 = vperm.xlu0 %1279, %v1214
        %v1281 = vpop.permute.xlu0 %1280
        %1284 = vset.pattern.permute.xlu0 0
        %1285 = vperm.xlu0 %1284, %v1216
        %v1286 = vpop.permute.xlu0 %1285
        %1289 = vset.pattern.permute.xlu0 0
        %1290 = vperm.xlu0 %1289, %v1218
        %v1291 = vpop.permute.xlu0 %1290
        %1294 = vset.pattern.permute.xlu0 0
        %1295 = vperm.xlu0 %1294, %v1220
        %v1296 = vpop.permute.xlu0 %1295
        %1299 = vset.pattern.permute.xlu0 0
        %1300 = vperm.xlu0 %1299, %v1222
        %v1301 = vpop.permute.xlu0 %1300
        %v1303 = vmul.f32 %v1226, %v1047
        %v1304 = vmul.f32 %v1231, %v1048
        %v1305 = vmul.f32 %v1236, %v1049
        %v1306 = vmul.f32 %v1241, %v1050
        %v1307 = vmul.f32 %v1246, %v1051
        %v1308 = vmul.f32 %v1251, %v1052
        %v1309 = vmul.f32 %v1256, %v1053
        %v1310 = vmul.f32 %v1261, %v1054
        %v1311 = vmul.f32 %v1266, %v1055
        %v1312 = vmul.f32 %v1271, %v1056
        %v1313 = vmul.f32 %v1276, %v1057
        %v1314 = vmul.f32 %v1281, %v1058
        %v1315 = vmul.f32 %v1286, %v1059
        %v1316 = vmul.f32 %v1291, %v1060
        %v1317 = vmul.f32 %v1296, %v1061
        %v1318 = vmul.f32 %v1301, %v1062
        %v1319 = vadd.f32 %v1303, %v1304
        %v1320 = vrot.slane %v1319, 4
        %v1321 = vadd.f32 %v1319, %v1320
        %v1322 = vrot.slane %v1321, 2
        %v1323 = vadd.f32 %v1321, %v1322
        %v1324 = vrot.slane %v1323, 1
        %v1325 = vadd.f32 %v1323, %v1324
        %v1326 = vmax.f32 %v1047, %v1048
        %v1327 = vrot.slane %v1326, 4
        %v1328 = vmax.f32 %v1326, %v1327
        %v1329 = vrot.slane %v1328, 2
        %v1330 = vmax.f32 %v1328, %v1329
        %v1331 = vrot.slane %v1330, 1
        %v1332 = vmax.f32 %v1330, %v1331
        %v1333 = vmul.f32 %v1325, %v288
        %v1334 = vmul.f32 %v1332, %v289
        %v1335 = vadd.f32 %v1333, %v1334
        %1336 = vadd.xlane.f32.xlu0 %v1335
        %v1337 = vpop.xlane.xlu0 %1336
        %v1338 = vadd.f32 %v1337, %v290
        %1340 = vrot.lane.b32.xlu0 %v1338, 127
        %v1341 = vpop.permute.xlu0 %1340
        %vm1343 = vcmask 0
        %1344 = vst.msk [vmem:[%s203] sm:$0x1] %vm1343, %v1341
        %v1345 = vadd.f32 %v1305, %v1306
        %v1346 = vrot.slane %v1345, 4
        %v1347 = vadd.f32 %v1345, %v1346
        %v1348 = vrot.slane %v1347, 2
        %v1349 = vadd.f32 %v1347, %v1348
        %v1350 = vrot.slane %v1349, 1
        %v1351 = vadd.f32 %v1349, %v1350
        %v1352 = vmax.f32 %v1049, %v1050
        %v1353 = vrot.slane %v1352, 4
        %v1354 = vmax.f32 %v1352, %v1353
        %v1355 = vrot.slane %v1354, 2
        %v1356 = vmax.f32 %v1354, %v1355
        %v1357 = vrot.slane %v1356, 1
        %v1358 = vmax.f32 %v1356, %v1357
        %v1359 = vmul.f32 %v1351, %v288
        %v1360 = vmul.f32 %v1358, %v289
        %v1361 = vadd.f32 %v1359, %v1360
        %1362 = vadd.xlane.f32.xlu0 %v1361
        %v1363 = vpop.xlane.xlu0 %1362
        %v1364 = vadd.f32 %v1363, %v290
        %1366 = vrot.lane.b32.xlu0 %v1364, 127
        %v1367 = vpop.permute.xlu0 %1366
        %1369 = vst.msk [vmem:[%s203 + $0x1] sm:$0x1] %vm1343, %v1367
        %v1370 = vadd.f32 %v1307, %v1308
        %v1371 = vrot.slane %v1370, 4
        %v1372 = vadd.f32 %v1370, %v1371
        %v1373 = vrot.slane %v1372, 2
        %v1374 = vadd.f32 %v1372, %v1373
        %v1375 = vrot.slane %v1374, 1
        %v1376 = vadd.f32 %v1374, %v1375
        %v1377 = vmax.f32 %v1051, %v1052
        %v1378 = vrot.slane %v1377, 4
        %v1379 = vmax.f32 %v1377, %v1378
        %v1380 = vrot.slane %v1379, 2
        %v1381 = vmax.f32 %v1379, %v1380
        %v1382 = vrot.slane %v1381, 1
        %v1383 = vmax.f32 %v1381, %v1382
        %v1384 = vmul.f32 %v1376, %v288
        %v1385 = vmul.f32 %v1383, %v289
        %v1386 = vadd.f32 %v1384, %v1385
        %1387 = vadd.xlane.f32.xlu0 %v1386
        %v1388 = vpop.xlane.xlu0 %1387
        %v1389 = vadd.f32 %v1388, %v290
        %1391 = vrot.lane.b32.xlu0 %v1389, 127
        %v1392 = vpop.permute.xlu0 %1391
        %1394 = vst.msk [vmem:[%s203 + $0x2] sm:$0x1] %vm1343, %v1392
        %v1395 = vadd.f32 %v1309, %v1310
        %v1396 = vrot.slane %v1395, 4
        %v1397 = vadd.f32 %v1395, %v1396
        %v1398 = vrot.slane %v1397, 2
        %v1399 = vadd.f32 %v1397, %v1398
        %v1400 = vrot.slane %v1399, 1
        %v1401 = vadd.f32 %v1399, %v1400
        %v1402 = vmax.f32 %v1053, %v1054
        %v1403 = vrot.slane %v1402, 4
        %v1404 = vmax.f32 %v1402, %v1403
        %v1405 = vrot.slane %v1404, 2
        %v1406 = vmax.f32 %v1404, %v1405
        %v1407 = vrot.slane %v1406, 1
        %v1408 = vmax.f32 %v1406, %v1407
        %v1409 = vmul.f32 %v1401, %v288
        %v1410 = vmul.f32 %v1408, %v289
        %v1411 = vadd.f32 %v1409, %v1410
        %1412 = vadd.xlane.f32.xlu0 %v1411
        %v1413 = vpop.xlane.xlu0 %1412
        %v1414 = vadd.f32 %v1413, %v290
        %1416 = vrot.lane.b32.xlu0 %v1414, 127
        %v1417 = vpop.permute.xlu0 %1416
        %1419 = vst.msk [vmem:[%s203 + $0x3] sm:$0x1] %vm1343, %v1417
        %v1420 = vadd.f32 %v1311, %v1312
        %v1421 = vrot.slane %v1420, 4
        %v1422 = vadd.f32 %v1420, %v1421
        %v1423 = vrot.slane %v1422, 2
        %v1424 = vadd.f32 %v1422, %v1423
        %v1425 = vrot.slane %v1424, 1
        %v1426 = vadd.f32 %v1424, %v1425
        %v1427 = vmax.f32 %v1055, %v1056
        %v1428 = vrot.slane %v1427, 4
        %v1429 = vmax.f32 %v1427, %v1428
        %v1430 = vrot.slane %v1429, 2
        %v1431 = vmax.f32 %v1429, %v1430
        %v1432 = vrot.slane %v1431, 1
        %v1433 = vmax.f32 %v1431, %v1432
        %v1434 = vmul.f32 %v1426, %v288
        %v1435 = vmul.f32 %v1433, %v289
        %v1436 = vadd.f32 %v1434, %v1435
        %1437 = vadd.xlane.f32.xlu0 %v1436
        %v1438 = vpop.xlane.xlu0 %1437
        %v1439 = vadd.f32 %v1438, %v290
        %1441 = vrot.lane.b32.xlu0 %v1439, 127
        %v1442 = vpop.permute.xlu0 %1441
        %1444 = vst.msk [vmem:[%s203 + $0x4] sm:$0x1] %vm1343, %v1442
        %v1445 = vadd.f32 %v1313, %v1314
        %v1446 = vrot.slane %v1445, 4
        %v1447 = vadd.f32 %v1445, %v1446
        %v1448 = vrot.slane %v1447, 2
        %v1449 = vadd.f32 %v1447, %v1448
        %v1450 = vrot.slane %v1449, 1
        %v1451 = vadd.f32 %v1449, %v1450
        %v1452 = vmax.f32 %v1057, %v1058
        %v1453 = vrot.slane %v1452, 4
        %v1454 = vmax.f32 %v1452, %v1453
        %v1455 = vrot.slane %v1454, 2
        %v1456 = vmax.f32 %v1454, %v1455
        %v1457 = vrot.slane %v1456, 1
        %v1458 = vmax.f32 %v1456, %v1457
        %v1459 = vmul.f32 %v1451, %v288
        %v1460 = vmul.f32 %v1458, %v289
        %v1461 = vadd.f32 %v1459, %v1460
        %1462 = vadd.xlane.f32.xlu0 %v1461
        %v1463 = vpop.xlane.xlu0 %1462
        %v1464 = vadd.f32 %v1463, %v290
        %1466 = vrot.lane.b32.xlu0 %v1464, 127
        %v1467 = vpop.permute.xlu0 %1466
        %1469 = vst.msk [vmem:[%s203 + $0x5] sm:$0x1] %vm1343, %v1467
        %v1470 = vadd.f32 %v1315, %v1316
        %v1471 = vrot.slane %v1470, 4
        %v1472 = vadd.f32 %v1470, %v1471
        %v1473 = vrot.slane %v1472, 2
        %v1474 = vadd.f32 %v1472, %v1473
        %v1475 = vrot.slane %v1474, 1
        %v1476 = vadd.f32 %v1474, %v1475
        %v1477 = vmax.f32 %v1059, %v1060
        %v1478 = vrot.slane %v1477, 4
        %v1479 = vmax.f32 %v1477, %v1478
        %v1480 = vrot.slane %v1479, 2
        %v1481 = vmax.f32 %v1479, %v1480
        %v1482 = vrot.slane %v1481, 1
        %v1483 = vmax.f32 %v1481, %v1482
        %v1484 = vmul.f32 %v1476, %v288
        %v1485 = vmul.f32 %v1483, %v289
        %v1486 = vadd.f32 %v1484, %v1485
        %1487 = vadd.xlane.f32.xlu0 %v1486
        %v1488 = vpop.xlane.xlu0 %1487
        %v1489 = vadd.f32 %v1488, %v290
        %1491 = vrot.lane.b32.xlu0 %v1489, 127
        %v1492 = vpop.permute.xlu0 %1491
        %1494 = vst.msk [vmem:[%s203 + $0x6] sm:$0x1] %vm1343, %v1492
        %v1495 = vadd.f32 %v1317, %v1318
        %v1496 = vrot.slane %v1495, 4
        %v1497 = vadd.f32 %v1495, %v1496
        %v1498 = vrot.slane %v1497, 2
        %v1499 = vadd.f32 %v1497, %v1498
        %v1500 = vrot.slane %v1499, 1
        %v1501 = vadd.f32 %v1499, %v1500
        %v1502 = vmax.f32 %v1061, %v1062
        %v1503 = vrot.slane %v1502, 4
        %v1504 = vmax.f32 %v1502, %v1503
        %v1505 = vrot.slane %v1504, 2
        %v1506 = vmax.f32 %v1504, %v1505
        %v1507 = vrot.slane %v1506, 1
        %v1508 = vmax.f32 %v1506, %v1507
        %v1509 = vmul.f32 %v1501, %v288
        %v1510 = vmul.f32 %v1508, %v289
        %v1511 = vadd.f32 %v1509, %v1510
        %1512 = vadd.xlane.f32.xlu0 %v1511
        %v1513 = vpop.xlane.xlu0 %1512
        %v1514 = vadd.f32 %v1513, %v290
        %1516 = vrot.lane.b32.xlu0 %v1514, 127
        %v1517 = vpop.permute.xlu0 %1516
        %1519 = vst.msk [vmem:[%s203 + $0x7] sm:$0x1] %vm1343, %v1517
        %p1520 = scmp.lt.s32.totalorder %s15, 1
        %s1521 = scalar_select %p1520, %s15, 1
        %s1522 = smul.addr %s1521, 8
        %s1523 = scalar_lea.vmem %s3, %s1522
        // Predicated region
        $region37: #{tpu_custom_call.1} parent=31 // pred_check
          %p1524 = pneg %p106
        $region38: #{tpu_custom_call.1} parent=31 // pred_check_branch
          %1526 = sbr.rel (%p1524) target = $region40
        $region39: #{tpu_custom_call.1} parent=31 // pred_region
          _
        $region40: #{tpu_custom_call.1} parent=31 // pred_fallthru
          _
      $region32: #{tpu_custom_call.1} parent=5 // pred_fallthru
        _
      %p1527 = scmp.le.s32.totalorder 2, %s10
      // Predicated region
      $region41: #{tpu_custom_call.1} parent=5 // pred_check
        %p1528 = pneg %p1527
      $region42: #{tpu_custom_call.1} parent=5 // pred_check_branch
        %1530 = sbr.rel (%p1528) target = $region44
      $region43: #{tpu_custom_call.1} parent=5 // pred_region
        %s1531 = ssub.s32 %s10, 2
        // Predicated region
        $region45: #{tpu_custom_call.1} parent=43 // pred_check
          %p1532 = pneg %p112
        $region46: #{tpu_custom_call.1} parent=43 // pred_check_branch
          %1534 = sbr.rel (%p1532) target = $region48
        $region47: #{tpu_custom_call.1} parent=43 // pred_region
          %p1535 = scmp.lt.s32.totalorder %s16, 1
          %s1536 = scalar_select %p1535, %s16, 1
          %s1537 = smul.addr %s1536, 8
          %s1538 = scalar_lea.vmem %s3, %s1537
        $region48: #{tpu_custom_call.1} parent=43 // pred_fallthru
          _
      $region44: #{tpu_custom_call.1} parent=5 // pred_fallthru
        _
    $region6: #{tpu_custom_call.1} parent=1 // loop_footer
      %s14 = sadd.s32 1, %s10
    $region7: #{tpu_custom_call.1} parent=1 // loop_footer_branch
      %9 = sbr.rel target = $region3
    $region8: #{tpu_custom_call.1} parent=1 // loop_exit
      _
    %1539 = vsyncpa [#allocation4], 1
    %s1540 = scalar_lea.sflag [#allocation4], 1
    %1541 = vsyncpa %s1540, 1

</llo_original>
